<compile_context>
chip_gen: v5e
topology: v5e:2x2
jax: 0.10.0
libtpu: 0.0.40
codegen_flags: <defaults>
</compile_context>

<pallas_src>
import functools

import jax
import jax.numpy as jnp
from jax.experimental import pallas as pl
from jax.experimental.pallas import tpu as pltpu

FC_DIM = 512                 # fixed by the module
_LANE = 128
_VMEM_BUDGET = 48 * 1024 * 1024   # leaves headroom on v7x (64 MiB physical)


def _round_up(n, m):
    return ((n + m - 1) // m) * m


def _vmem_bytes(bb, k_pad, n_pad):
    """Rough VMEM footprint: double-buffered x/out tiles + resident weights."""
    b = 0
    b += 2 * bb * k_pad * 2                                   # x tile, bf16
    b += 2 * bb * n_pad * 4                                   # out tile, <=f32
    w = (k_pad * FC_DIM + FC_DIM * FC_DIM + FC_DIM * n_pad) * 2   # weights bf16
    s = (FC_DIM + FC_DIM + n_pad) * 4                             # biases f32
    b += 2 * (w + s)                                          # (assume 2 bufs)
    b += 2 * bb * FC_DIM * 4                                  # h1/h2 f32 temps
    return b


def _pick_batch_tile(B, block_b, k_pad, n_pad):
    """Batch tile (multiple of 128), tail-waste- and VMEM-aware."""
    b128 = _round_up(B, _LANE)
    # Enough tiles to keep each tile <= block_b; at least 2 tiles when the
    # batch is big enough so the 'parallel' axis shards across both v7x
    # TensorCores (no-op on single-TC v5e/v6e).
    n_tiles = pl.cdiv(b128, block_b)
    if b128 >= 2 * _LANE:
        n_tiles = max(n_tiles, 2)
    bb = _round_up(pl.cdiv(b128, n_tiles), _LANE)
    # Shrink the tile if the VMEM estimate would blow the budget.
    while bb > _LANE and _vmem_bytes(bb, k_pad, n_pad) > _VMEM_BUDGET:
        bb -= _LANE
    b_pad = _round_up(b128, bb)
    return bb, b_pad


def _fc_block_kernel(x_ref, w1_ref, b1_ref, w2_ref, b2_ref, w3_ref, b3_ref,
                     o_ref):
    # Hot path: 3 MXU matmuls (bf16 in, f32 acc) + VPU bias-add / ReLU.
    x = x_ref[...]                                            # bf16 (bb, Kp)
    h1 = jnp.dot(x, w1_ref[...], preferred_element_type=jnp.float32)
    h1 = jnp.maximum(h1 + b1_ref[...], 0.0)                   # Linear -> ReLU
    # Dropout(0.5): identity in eval mode.
    h2 = jnp.dot(h1.astype(jnp.bfloat16), w2_ref[...],
                 preferred_element_type=jnp.float32)
    h2 = jnp.maximum(h2 + b2_ref[...], 0.0)                   # Linear -> ReLU
    # Dropout(0.5): identity in eval mode.
    out = jnp.dot(h2.astype(jnp.bfloat16), w3_ref[...],
                  preferred_element_type=jnp.float32)
    out = out + b3_ref[...]
    o_ref[...] = out.astype(o_ref.dtype)


def prepare_params(params):
    """Pad + cast weights ONCE (call outside the per-step forward).

    Returns a pytree of padded bf16 weights / f32 biases ready for the kernel.
    """
    in_dim = params["w1"].shape[0]
    out_dim = params["w3"].shape[1]
    k_pad = _round_up(in_dim, _LANE)
    n_pad = _round_up(out_dim, _LANE)
    return dict(
        w1=jnp.pad(params["w1"], ((0, k_pad - in_dim), (0, 0))).astype(jnp.bfloat16),
        b1=params["b1"].reshape(1, FC_DIM).astype(jnp.float32),
        w2=params["w2"].astype(jnp.bfloat16),
        b2=params["b2"].reshape(1, FC_DIM).astype(jnp.float32),
        w3=jnp.pad(params["w3"], ((0, 0), (0, n_pad - out_dim))).astype(jnp.bfloat16),
        b3=jnp.pad(params["b3"].reshape(1, -1),
                   ((0, 0), (0, n_pad - out_dim))).astype(jnp.float32),
    )


@functools.partial(jax.jit,
                   static_argnames=("out_dim", "block_b", "out_dtype"))
def fc_block_forward(x, prep, *, out_dim, block_b=512, out_dtype=jnp.float32):
    """x: (B, input_size) float32.  prep: output of prepare_params()."""
    B, in_dim = x.shape
    k_pad = prep["w1"].shape[0]
    n_pad = prep["w3"].shape[1]

    bb, b_pad = _pick_batch_tile(B, block_b, k_pad, n_pad)

    # Only x is padded / cast per call (weights were prepared once).
    xb = jnp.pad(x, ((0, b_pad - B), (0, k_pad - in_dim))).astype(jnp.bfloat16)

    grid = (b_pad // bb,)
    full = lambda shape: pl.BlockSpec(shape, lambda i: (0, 0))

    vmem_limit = int(min(64 * 1024 * 1024,
                         max(16 * 1024 * 1024,
                             int(1.5 * _vmem_bytes(bb, k_pad, n_pad)))))

    out = pl.pallas_call(
        _fc_block_kernel,
        out_shape=jax.ShapeDtypeStruct((b_pad, n_pad), out_dtype),
        grid_spec=pltpu.PrefetchScalarGridSpec(
            num_scalar_prefetch=0,
            grid=grid,
            in_specs=[
                pl.BlockSpec((bb, k_pad), lambda i: (i, 0)),   # x (batch-tiled)
                full((k_pad, FC_DIM)),                         # w1 (resident)
                full((1, FC_DIM)),                             # b1
                full((FC_DIM, FC_DIM)),                        # w2
                full((1, FC_DIM)),                             # b2
                full((FC_DIM, n_pad)),                         # w3
                full((1, n_pad)),                              # b3
            ],
            out_specs=pl.BlockSpec((bb, n_pad), lambda i: (i, 0)),
        ),
        compiler_params=pltpu.CompilerParams(
            # Batch axis is embarrassingly parallel -> megacore split on v7x.
            dimension_semantics=("parallel",),
            vmem_limit_bytes=vmem_limit,
        ),
    )(xb, prep["w1"], prep["b1"], prep["w2"], prep["b2"], prep["w3"],
      prep["b3"])

    # Strip padding only if any was added (padded rows/lanes are garbage:
    # ReLU(b) > 0 on zero rows — never return the padded buffer unsliced).
    if b_pad != B or n_pad != out_dim:
        out = out[:B, :out_dim]
    return out


def init_params(key, input_size, output_size, dtype=jnp.float32):
    """Deterministic synthetic params (nn.Linear-style uniform init)."""
    ks = jax.random.split(key, 6)

    def linear(kw, kb, fan_in, fan_out):
        bound = 1.0 / (fan_in ** 0.5)
        w = jax.random.uniform(kw, (fan_in, fan_out), dtype, -bound, bound)
        b = jax.random.uniform(kb, (1, fan_out), dtype, -bound, bound)
        return w, b

    w1, b1 = linear(ks[0], ks[1], input_size, FC_DIM)
    w2, b2 = linear(ks[2], ks[3], FC_DIM, FC_DIM)
    w3, b3 = linear(ks[4], ks[5], FC_DIM, output_size)
    return dict(w1=w1, b1=b1, w2=w2, b2=b2, w3=w3, b3=b3)


def reference_forward(x, p):
    # Pure-f32 reference (eval mode: dropout = identity).
    h1 = jnp.maximum(x @ p["w1"] + p["b1"], 0.0)
    h2 = jnp.maximum(h1 @ p["w2"] + p["b2"], 0.0)
    return h2 @ p["w3"] + p["b3"]


if __name__ == "__main__":
    key = jax.random.PRNGKey(0)
    k_x, k_p = jax.random.split(key)

    batch, input_size, output_size = 8, 32, 16
    x = jax.random.normal(k_x, (batch, input_size), jnp.float32)
    params = init_params(k_p, input_size, output_size)

    prep = prepare_params(params)          # one-time pad + bf16 cast
    out = fc_block_forward(x, prep, out_dim=output_size)
    out = jax.block_until_ready(out)

    ref = reference_forward(x, params)
    assert out.shape == (batch, output_size)
    # bf16 matmul inputs with f32 accumulation -> looser tolerance than f32.
    assert jnp.allclose(out, ref, atol=5e-2, rtol=5e-2), (
        float(jnp.max(jnp.abs(out - ref))))

    print("KERNEL_OK")
</pallas_src>

<mosaic_0001>
module attributes {stable_mosaic.version = 11 : i64} {
  func.func @_fc_block_kernel(%arg0: i32, %arg1: memref<128x128xbf16, #tpu.memory_space<vmem>>, %arg2: memref<128x512xbf16, #tpu.memory_space<vmem>>, %arg3: memref<1x512xf32, #tpu.memory_space<vmem>>, %arg4: memref<512x512xbf16, #tpu.memory_space<vmem>>, %arg5: memref<1x512xf32, #tpu.memory_space<vmem>>, %arg6: memref<512x128xbf16, #tpu.memory_space<vmem>>, %arg7: memref<1x128xf32, #tpu.memory_space<vmem>>, %arg8: memref<128x128xf32, #tpu.memory_space<vmem>>) attributes {dimension_semantics = [#tpu.dimension_semantics<parallel>], iteration_bounds = array<i64: 1>, scalar_prefetch = 0 : i64, scratch_operands = 0 : i64, tpu.core_type = #tpu.core_type<tc>, window_params = [{transform_indices = @transform_0, window_bounds = array<i64: 128, 128>}, {pipeline_mode = #tpu.pipeline_mode<synchronous>, transform_indices = @transform_1, window_bounds = array<i64: 128, 512>}, {pipeline_mode = #tpu.pipeline_mode<synchronous>, transform_indices = @transform_2, window_bounds = array<i64: 1, 512>}, {pipeline_mode = #tpu.pipeline_mode<synchronous>, transform_indices = @transform_3, window_bounds = array<i64: 512, 512>}, {pipeline_mode = #tpu.pipeline_mode<synchronous>, transform_indices = @transform_4, window_bounds = array<i64: 1, 512>}, {pipeline_mode = #tpu.pipeline_mode<synchronous>, transform_indices = @transform_5, window_bounds = array<i64: 512, 128>}, {pipeline_mode = #tpu.pipeline_mode<synchronous>, transform_indices = @transform_6, window_bounds = array<i64: 1, 128>}, {transform_indices = @transform_7, window_bounds = array<i64: 128, 128>}]} {
    %c0 = arith.constant 0 : index
    %c0_0 = arith.constant 0 : index
    %0 = vector.load %arg1[%c0, %c0_0] : memref<128x128xbf16, #tpu.memory_space<vmem>>, vector<128x128xbf16>
    %c0_1 = arith.constant 0 : index
    %c0_2 = arith.constant 0 : index
    %1 = vector.load %arg2[%c0_1, %c0_2] : memref<128x512xbf16, #tpu.memory_space<vmem>>, vector<128x512xbf16>
    %cst = arith.constant dense<0.000000e+00> : vector<128x512xf32>
    %2 = tpu.matmul %0, %1, %cst {dimension_numbers = #tpu.dot_dimension_numbers<[1], [0], [0], [1], [0, 0, 1, 1], [], []>} : vector<128x128xbf16>, vector<128x512xbf16>, vector<128x512xf32> -> vector<128x512xf32>
    %c0_3 = arith.constant 0 : index
    %c0_4 = arith.constant 0 : index
    %3 = vector.load %arg3[%c0_3, %c0_4] : memref<1x512xf32, #tpu.memory_space<vmem>>, vector<1x512xf32>
    %4 = vector.broadcast %3 : vector<1x512xf32> to vector<128x512xf32>
    %5 = arith.addf %2, %4 : vector<128x512xf32>
    %cst_5 = arith.constant 0.000000e+00 : f32
    %6 = vector.broadcast %cst_5 : f32 to vector<128x512xf32>
    %7 = arith.maximumf %5, %6 : vector<128x512xf32>
    %8 = arith.truncf %7 : vector<128x512xf32> to vector<128x512xbf16>
    %c0_6 = arith.constant 0 : index
    %c0_7 = arith.constant 0 : index
    %9 = vector.load %arg4[%c0_6, %c0_7] : memref<512x512xbf16, #tpu.memory_space<vmem>>, vector<512x512xbf16>
    %cst_8 = arith.constant dense<0.000000e+00> : vector<128x512xf32>
    %10 = tpu.matmul %8, %9, %cst_8 {dimension_numbers = #tpu.dot_dimension_numbers<[1], [0], [0], [1], [0, 0, 1, 1], [], []>} : vector<128x512xbf16>, vector<512x512xbf16>, vector<128x512xf32> -> vector<128x512xf32>
    %c0_9 = arith.constant 0 : index
    %c0_10 = arith.constant 0 : index
    %11 = vector.load %arg5[%c0_9, %c0_10] : memref<1x512xf32, #tpu.memory_space<vmem>>, vector<1x512xf32>
    %12 = vector.broadcast %11 : vector<1x512xf32> to vector<128x512xf32>
    %13 = arith.addf %10, %12 : vector<128x512xf32>
    %cst_11 = arith.constant 0.000000e+00 : f32
    %14 = vector.broadcast %cst_11 : f32 to vector<128x512xf32>
    %15 = arith.maximumf %13, %14 : vector<128x512xf32>
    %16 = arith.truncf %15 : vector<128x512xf32> to vector<128x512xbf16>
    %c0_12 = arith.constant 0 : index
    %c0_13 = arith.constant 0 : index
    %17 = vector.load %arg6[%c0_12, %c0_13] : memref<512x128xbf16, #tpu.memory_space<vmem>>, vector<512x128xbf16>
    %cst_14 = arith.constant dense<0.000000e+00> : vector<128x128xf32>
    %18 = tpu.matmul %16, %17, %cst_14 {dimension_numbers = #tpu.dot_dimension_numbers<[1], [0], [0], [1], [0, 0, 1, 1], [], []>} : vector<128x512xbf16>, vector<512x128xbf16>, vector<128x128xf32> -> vector<128x128xf32>
    %c0_15 = arith.constant 0 : index
    %c0_16 = arith.constant 0 : index
    %19 = vector.load %arg7[%c0_15, %c0_16] : memref<1x128xf32, #tpu.memory_space<vmem>>, vector<1x128xf32>
    %20 = vector.broadcast %19 : vector<1x128xf32> to vector<128x128xf32>
    %21 = arith.addf %18, %20 : vector<128x128xf32>
    %c0_17 = arith.constant 0 : index
    %c0_18 = arith.constant 0 : index
    %22 = vector.load %arg8[%c0_17, %c0_18] : memref<128x128xf32, #tpu.memory_space<vmem>>, vector<128x128xf32>
    tpu.vector_store %arg8[%c0_17, %c0_18], %21 {strides = array<i32>} : memref<128x128xf32, #tpu.memory_space<vmem>>, vector<128x128xf32>,
    return
  }
  func.func @transform_0(%arg0: i32) -> (i32, i32) {
    %c0_i32 = arith.constant 0 : i32
    %c0_i32_0 = arith.constant 0 : i32
    return %arg0, %c0_i32 : i32, i32
  }
  func.func @transform_1(%arg0: i32) -> (i32, i32) {
    %c0_i32 = arith.constant 0 : i32
    %c0_i32_0 = arith.constant 0 : i32
    %c0_i32_1 = arith.constant 0 : i32
    return %c0_i32, %c0_i32_0 : i32, i32
  }
  func.func @transform_2(%arg0: i32) -> (i32, i32) {
    %c0_i32 = arith.constant 0 : i32
    %c0_i32_0 = arith.constant 0 : i32
    %c0_i32_1 = arith.constant 0 : i32
    return %c0_i32, %c0_i32_0 : i32, i32
  }
  func.func @transform_3(%arg0: i32) -> (i32, i32) {
    %c0_i32 = arith.constant 0 : i32
    %c0_i32_0 = arith.constant 0 : i32
    %c0_i32_1 = arith.constant 0 : i32
    return %c0_i32, %c0_i32_0 : i32, i32
  }
  func.func @transform_4(%arg0: i32) -> (i32, i32) {
    %c0_i32 = arith.constant 0 : i32
    %c0_i32_0 = arith.constant 0 : i32
    %c0_i32_1 = arith.constant 0 : i32
    return %c0_i32, %c0_i32_0 : i32, i32
  }
  func.func @transform_5(%arg0: i32) -> (i32, i32) {
    %c0_i32 = arith.constant 0 : i32
    %c0_i32_0 = arith.constant 0 : i32
    %c0_i32_1 = arith.constant 0 : i32
    return %c0_i32, %c0_i32_0 : i32, i32
  }
  func.func @transform_6(%arg0: i32) -> (i32, i32) {
    %c0_i32 = arith.constant 0 : i32
    %c0_i32_0 = arith.constant 0 : i32
    %c0_i32_1 = arith.constant 0 : i32
    return %c0_i32, %c0_i32_0 : i32, i32
  }
  func.func @transform_7(%arg0: i32) -> (i32, i32) {
    %c0_i32 = arith.constant 0 : i32
    %c0_i32_0 = arith.constant 0 : i32
    return %arg0, %c0_i32 : i32, i32
  }
}

</mosaic_0001>

<llo_original>
// kernel: fc_block_forward.1
$region0: #{fc_block_forward.1}
  #allocation0 [shape = 'u32[]', space=smem, size = 0x4, offset = 0x4, fixed_abs, tag = 'smem constant byte address 0x4 - core index']
  #allocation1 [shape = 'u32[72,128]{1,0:T(1,128)}', space=vmem, size = 0x9000, scoped, tag = 'internal scratch']
  %s0 = inlined_call_operand.vmem [shape: bf16[128,128], index: 0, kind: input, shape index: {}]
  %s1 = inlined_call_operand.hbm [shape: bf16[128,512], index: 1, kind: input, shape index: {}]
  %s2 = inlined_call_operand.vmem [shape: f32[1,512], index: 2, kind: input, shape index: {}]
  %s3 = inlined_call_operand.hbm [shape: bf16[512,512], index: 3, kind: input, shape index: {}]
  %s4 = inlined_call_operand.vmem [shape: f32[1,512], index: 4, kind: input, shape index: {}]
  %s5 = inlined_call_operand.hbm [shape: bf16[512,128], index: 5, kind: input, shape index: {}]
  %s6 = inlined_call_operand.vmem [shape: f32[1,128], index: 6, kind: input, shape index: {}]
  %s7 = inlined_call_operand.vmem [shape: f32[128,128], index: 7, kind: output, shape index: {}]
  %s8 = sld [smem:[#allocation0]]
  $region50: #{fc_block_forward.1} parent=0
    _
  %s10 = ssub.s32 1, %s8
  %s11 = scalar_select 0, %s10, %s8
  $region1: #{fc_block_forward.1} parent=0
    #allocation2 [shape = 'u8[131072]{0}', space=vmem, size = 0x20000, scoped, tag = 'input window, operand 1, single buffered']
    #allocation3 [shape = 's32[1]{0}', space=sflag, size = 0x4, scoped, tag = 'scoped memory for fc_block_forward.1']
    #allocation4 [shape = 'u8[524288]{0}', space=vmem, size = 0x80000, scoped, tag = 'input window, operand 3, single buffered']
    #allocation5 [shape = 's32[1]{0}', space=sflag, size = 0x4, scoped, tag = 'scoped memory for fc_block_forward.1']
    #allocation6 [shape = 'u8[131072]{0}', space=vmem, size = 0x20000, scoped, tag = 'input window, operand 5, single buffered']
    %12 = vsyncpa [#allocation3], 0
    %13 = vsyncpa [#allocation5], 0
    // Predicated region
    $region2: #{fc_block_forward.1} parent=1 // pred_check
      _
    $region3: #{fc_block_forward.1} parent=1 // pred_check_branch
      %15 = sbr.rel (0) target = $region5
    $region4: #{fc_block_forward.1} parent=1 // pred_region
      _
    $region5: #{fc_block_forward.1} parent=1 // pred_fallthru
      _
    // Predicated region
    $region6: #{fc_block_forward.1} parent=1 // pred_check
      _
    $region7: #{fc_block_forward.1} parent=1 // pred_check_branch
      %17 = sbr.rel (0) target = $region9
    $region8: #{fc_block_forward.1} parent=1 // pred_region
      %19 = vsyncadd [#allocation3], 0
      %s20 = sshll.u32 %s1, 4
      %s21 = int_to_ptr.hbm [resolvable:$true] %s20
      %s22 = sshll.u32 [#allocation2], 4
      %s23 = int_to_ptr.vmem [resolvable:$true] %s22
      %28 = dma.hbm_to_vmem [thread:$0]  %s21, 4096, %s23, [#allocation3], 256, 256, 16
    $region9: #{fc_block_forward.1} parent=1 // pred_fallthru
      _
    // Predicated region
    $region10: #{fc_block_forward.1} parent=1 // pred_check
      _
    $region11: #{fc_block_forward.1} parent=1 // pred_check_branch
      %30 = sbr.rel (0) target = $region13
    $region12: #{fc_block_forward.1} parent=1 // pred_region
      _
    $region13: #{fc_block_forward.1} parent=1 // pred_fallthru
      _
    // Predicated region
    $region14: #{fc_block_forward.1} parent=1 // pred_check
      _
    $region15: #{fc_block_forward.1} parent=1 // pred_check_branch
      %32 = sbr.rel (0) target = $region17
    $region16: #{fc_block_forward.1} parent=1 // pred_region
      %34 = vsyncadd [#allocation5], 0
      %s35 = sshll.u32 %s3, 4
      %s36 = int_to_ptr.hbm [resolvable:$true] %s35
      %s37 = sshll.u32 [#allocation4], 4
      %s38 = int_to_ptr.vmem [resolvable:$true] %s37
      %43 = dma.hbm_to_vmem [thread:$0]  %s36, 16384, %s38, [#allocation5], 256, 256, 16
    $region17: #{fc_block_forward.1} parent=1 // pred_fallthru
      _
    // Predicated region
    $region18: #{fc_block_forward.1} parent=1 // pred_check
      _
    $region19: #{fc_block_forward.1} parent=1 // pred_check_branch
      %45 = sbr.rel (0) target = $region21
    $region20: #{fc_block_forward.1} parent=1 // pred_region
      _
    $region21: #{fc_block_forward.1} parent=1 // pred_fallthru
      _
    // Predicated region
    $region22: #{fc_block_forward.1} parent=1 // pred_check
      _
    $region23: #{fc_block_forward.1} parent=1 // pred_check_branch
      %47 = sbr.rel (0) target = $region25
    $region24: #{fc_block_forward.1} parent=1 // pred_region
      %49 = vsyncadd [#allocation5], 0
      %s50 = sshll.u32 %s5, 4
      %s51 = int_to_ptr.hbm [resolvable:$true] %s50
      %s52 = sshll.u32 [#allocation6], 4
      %s53 = int_to_ptr.vmem [resolvable:$true] %s52
      %58 = dma.hbm_to_vmem [thread:$0]  %s51, 4096, %s53, [#allocation5], 64, 64, 4
    $region25: #{fc_block_forward.1} parent=1 // pred_fallthru
      _
    // Predicated region
    $region26: #{fc_block_forward.1} parent=1 // pred_check
      _
    $region27: #{fc_block_forward.1} parent=1 // pred_check_branch
      %60 = sbr.rel (0) target = $region29
    $region28: #{fc_block_forward.1} parent=1 // pred_region
      _
    $region29: #{fc_block_forward.1} parent=1 // pred_fallthru
      _
    // Predicated region
    $region30: #{fc_block_forward.1} parent=1 // pred_check
      _
    $region31: #{fc_block_forward.1} parent=1 // pred_check_branch
      %62 = sbr.rel (0) target = $region33
    $region32: #{fc_block_forward.1} parent=1 // pred_region
      %64 = dma.done [#allocation3], 4096
    $region33: #{fc_block_forward.1} parent=1 // pred_fallthru
      _
    // Predicated region
    $region34: #{fc_block_forward.1} parent=1 // pred_check
      _
    $region35: #{fc_block_forward.1} parent=1 // pred_check_branch
      %66 = sbr.rel (0) target = $region37
    $region36: #{fc_block_forward.1} parent=1 // pred_region
      %68 = dma.done [#allocation5], 16384
    $region37: #{fc_block_forward.1} parent=1 // pred_fallthru
      _
    // Predicated region
    $region38: #{fc_block_forward.1} parent=1 // pred_check
      _
    $region39: #{fc_block_forward.1} parent=1 // pred_check_branch
      %70 = sbr.rel (0) target = $region41
    $region40: #{fc_block_forward.1} parent=1 // pred_region
      %72 = dma.done [#allocation5], 4096
    $region41: #{fc_block_forward.1} parent=1 // pred_fallthru
      _
    %v73 = vld [vmem:[%s0] sm:$0xf]
    %v74 = vld [vmem:[%s0 + $0x4] sm:$0xf]
    %v75 = vld [vmem:[%s0 + $0x8] sm:$0xf]
    %v76 = vld [vmem:[%s0 + $0xc] sm:$0xf]
    %v77 = vld [vmem:[%s0 + $0x10] sm:$0xf]
    %v78 = vld [vmem:[%s0 + $0x14] sm:$0xf]
    %v79 = vld [vmem:[%s0 + $0x18] sm:$0xf]
    %v80 = vld [vmem:[%s0 + $0x1c] sm:$0xf]
    %v81 = vld [vmem:[%s0 + $0x20] sm:$0xf]
    %v82 = vld [vmem:[%s0 + $0x24] sm:$0xf]
    %v83 = vld [vmem:[%s0 + $0x28] sm:$0xf]
    %v84 = vld [vmem:[%s0 + $0x2c] sm:$0xf]
    %v85 = vld [vmem:[%s0 + $0x30] sm:$0xf]
    %v86 = vld [vmem:[%s0 + $0x34] sm:$0xf]
    %v87 = vld [vmem:[%s0 + $0x38] sm:$0xf]
    %v88 = vld [vmem:[%s0 + $0x3c] sm:$0xf]
    %v89 = vld [vmem:[#allocation2] sm:$0xff]
    %v90 = vld [vmem:[#allocation2 + $0x8] sm:$0xff]
    %v91 = vld [vmem:[#allocation2 + $0x10] sm:$0xff]
    %v92 = vld [vmem:[#allocation2 + $0x18] sm:$0xff]
    %v93 = vld [vmem:[#allocation2 + $0x20] sm:$0xff]
    %v94 = vld [vmem:[#allocation2 + $0x28] sm:$0xff]
    %v95 = vld [vmem:[#allocation2 + $0x30] sm:$0xff]
    %v96 = vld [vmem:[#allocation2 + $0x38] sm:$0xff]
    %v97 = vld [vmem:[#allocation2 + $0x40] sm:$0xff]
    %v98 = vld [vmem:[#allocation2 + $0x48] sm:$0xff]
    %v99 = vld [vmem:[#allocation2 + $0x50] sm:$0xff]
    %v100 = vld [vmem:[#allocation2 + $0x58] sm:$0xff]
    %v101 = vld [vmem:[#allocation2 + $0x60] sm:$0xff]
    %v102 = vld [vmem:[#allocation2 + $0x68] sm:$0xff]
    %v103 = vld [vmem:[#allocation2 + $0x70] sm:$0xff]
    %v104 = vld [vmem:[#allocation2 + $0x78] sm:$0xff]
    %v105 = vld [vmem:[#allocation2 + $0x80] sm:$0xff]
    %v106 = vld [vmem:[#allocation2 + $0x88] sm:$0xff]
    %v107 = vld [vmem:[#allocation2 + $0x90] sm:$0xff]
    %v108 = vld [vmem:[#allocation2 + $0x98] sm:$0xff]
    %v109 = vld [vmem:[#allocation2 + $0xa0] sm:$0xff]
    %v110 = vld [vmem:[#allocation2 + $0xa8] sm:$0xff]
    %v111 = vld [vmem:[#allocation2 + $0xb0] sm:$0xff]
    %v112 = vld [vmem:[#allocation2 + $0xb8] sm:$0xff]
    %v113 = vld [vmem:[#allocation2 + $0xc0] sm:$0xff]
    %v114 = vld [vmem:[#allocation2 + $0xc8] sm:$0xff]
    %v115 = vld [vmem:[#allocation2 + $0xd0] sm:$0xff]
    %v116 = vld [vmem:[#allocation2 + $0xd8] sm:$0xff]
    %v117 = vld [vmem:[#allocation2 + $0xe0] sm:$0xff]
    %v118 = vld [vmem:[#allocation2 + $0xe8] sm:$0xff]
    %v119 = vld [vmem:[#allocation2 + $0xf0] sm:$0xff]
    %v120 = vld [vmem:[#allocation2 + $0xf8] sm:$0xff]
    %v121 = vld [vmem:[%s2] sm:$0xf]
    %v123 = vperm.slane %v121, 0
    %v124 = vperm.slane %v121, 1
    %v125 = vperm.slane %v121, 2
    %v126 = vperm.slane %v121, 3
    %v147 = vunpack.c.l.b16 %v73
    %v148 = vunpack.c.l.b16 %v74
    %v149 = vunpack.c.l.b16 %v75
    %v150 = vunpack.c.l.b16 %v76
    %v151 = vunpack.c.l.b16 %v77
    %v152 = vunpack.c.l.b16 %v78
    %v153 = vunpack.c.l.b16 %v79
    %v154 = vunpack.c.l.b16 %v80
    %v155 = vunpack.c.l.b16 %v81
    %v156 = vunpack.c.l.b16 %v82
    %v157 = vunpack.c.l.b16 %v83
    %v158 = vunpack.c.l.b16 %v84
    %v159 = vunpack.c.l.b16 %v85
    %v160 = vunpack.c.l.b16 %v86
    %v161 = vunpack.c.l.b16 %v87
    %v162 = vunpack.c.l.b16 %v88
    %v163 = vpack.c.b16 %v148, %v147
    %v164 = vpack.c.b16 %v150, %v149
    %v165 = vpack.c.b16 %v152, %v151
    %v166 = vpack.c.b16 %v154, %v153
    %v167 = vpack.c.b16 %v156, %v155
    %v168 = vpack.c.b16 %v158, %v157
    %v169 = vpack.c.b16 %v160, %v159
    %v170 = vpack.c.b16 %v162, %v161
    %v211 = vunpack.c.l.b16 %v89
    %v212 = vunpack.c.h.b16 %v89
    %v213 = vunpack.c.l.b16 %v90
    %v214 = vunpack.c.h.b16 %v90
    %v215 = vunpack.c.l.b16 %v91
    %v216 = vunpack.c.h.b16 %v91
    %v217 = vunpack.c.l.b16 %v92
    %v218 = vunpack.c.h.b16 %v92
    %v219 = vunpack.c.l.b16 %v93
    %v220 = vunpack.c.h.b16 %v93
    %v221 = vunpack.c.l.b16 %v94
    %v222 = vunpack.c.h.b16 %v94
    %v223 = vunpack.c.l.b16 %v95
    %v224 = vunpack.c.h.b16 %v95
    %v225 = vunpack.c.l.b16 %v96
    %v226 = vunpack.c.h.b16 %v96
    %v227 = vunpack.c.l.b16 %v97
    %v228 = vunpack.c.h.b16 %v97
    %v229 = vunpack.c.l.b16 %v98
    %v230 = vunpack.c.h.b16 %v98
    %v231 = vunpack.c.l.b16 %v99
    %v232 = vunpack.c.h.b16 %v99
    %v233 = vunpack.c.l.b16 %v100
    %v234 = vunpack.c.h.b16 %v100
    %v235 = vunpack.c.l.b16 %v101
    %v236 = vunpack.c.h.b16 %v101
    %v237 = vunpack.c.l.b16 %v102
    %v238 = vunpack.c.h.b16 %v102
    %v239 = vunpack.c.l.b16 %v103
    %v240 = vunpack.c.h.b16 %v103
    %v241 = vunpack.c.l.b16 %v104
    %v242 = vunpack.c.h.b16 %v104
    %v243 = vunpack.c.l.b16 %v105
    %v244 = vunpack.c.h.b16 %v105
    %v245 = vunpack.c.l.b16 %v106
    %v246 = vunpack.c.h.b16 %v106
    %v247 = vunpack.c.l.b16 %v107
    %v248 = vunpack.c.h.b16 %v107
    %v249 = vunpack.c.l.b16 %v108
    %v250 = vunpack.c.h.b16 %v108
    %v251 = vunpack.c.l.b16 %v109
    %v252 = vunpack.c.h.b16 %v109
    %v253 = vunpack.c.l.b16 %v110
    %v254 = vunpack.c.h.b16 %v110
    %v255 = vunpack.c.l.b16 %v111
    %v256 = vunpack.c.h.b16 %v111
    %v257 = vunpack.c.l.b16 %v112
    %v258 = vunpack.c.h.b16 %v112
    %v259 = vunpack.c.l.b16 %v113
    %v260 = vunpack.c.h.b16 %v113
    %v261 = vunpack.c.l.b16 %v114
    %v262 = vunpack.c.h.b16 %v114
    %v263 = vunpack.c.l.b16 %v115
    %v264 = vunpack.c.h.b16 %v115
    %v265 = vunpack.c.l.b16 %v116
    %v266 = vunpack.c.h.b16 %v116
    %v267 = vunpack.c.l.b16 %v117
    %v268 = vunpack.c.h.b16 %v117
    %v269 = vunpack.c.l.b16 %v118
    %v270 = vunpack.c.h.b16 %v118
    %v271 = vunpack.c.l.b16 %v119
    %v272 = vunpack.c.h.b16 %v119
    %v273 = vunpack.c.l.b16 %v120
    %v274 = vunpack.c.h.b16 %v120
    %v275 = vpack.c.b16 %v215, %v211
    %v276 = vpack.c.b16 %v216, %v212
    %v277 = vpack.c.b16 %v217, %v213
    %v278 = vpack.c.b16 %v218, %v214
    %v279 = vpack.c.b16 %v223, %v219
    %v280 = vpack.c.b16 %v224, %v220
    %v281 = vpack.c.b16 %v225, %v221
    %v282 = vpack.c.b16 %v226, %v222
    %v283 = vpack.c.b16 %v231, %v227
    %v284 = vpack.c.b16 %v232, %v228
    %v285 = vpack.c.b16 %v233, %v229
    %v286 = vpack.c.b16 %v234, %v230
    %v287 = vpack.c.b16 %v239, %v235
    %v288 = vpack.c.b16 %v240, %v236
    %v289 = vpack.c.b16 %v241, %v237
    %v290 = vpack.c.b16 %v242, %v238
    %v291 = vpack.c.b16 %v247, %v243
    %v292 = vpack.c.b16 %v248, %v244
    %v293 = vpack.c.b16 %v249, %v245
    %v294 = vpack.c.b16 %v250, %v246
    %v295 = vpack.c.b16 %v255, %v251
    %v296 = vpack.c.b16 %v256, %v252
    %v297 = vpack.c.b16 %v257, %v253
    %v298 = vpack.c.b16 %v258, %v254
    %v299 = vpack.c.b16 %v263, %v259
    %v300 = vpack.c.b16 %v264, %v260
    %v301 = vpack.c.b16 %v265, %v261
    %v302 = vpack.c.b16 %v266, %v262
    %v303 = vpack.c.b16 %v271, %v267
    %v304 = vpack.c.b16 %v272, %v268
    %v305 = vpack.c.b16 %v273, %v269
    %v306 = vpack.c.b16 %v274, %v270
    %339 = vmatpush.bf16.msra.mxu0 %v303
    %340 = vmatpush.bf16.msra.mxu0 %v299
    %341 = vmatpush.bf16.msra.mxu0 %v295
    %342 = vmatpush.bf16.msra.mxu0 %v291
    %343 = vmatpush.bf16.msra.mxu0 %v287
    %344 = vmatpush.bf16.msra.mxu0 %v283
    %345 = vmatpush.bf16.msra.mxu0 %v279
    %346 = vmatpush.bf16.msra.mxu0 %v275
    %347 = vmatmul.bf16.gmra.mxu0 %v163
    %v348 = vpop.f32.mrf.mxu0
    %v349 = vadd.f32 %v123, %v348
    %v350 = vpop.f32.mrf.mxu0
    %v351 = vadd.f32 %v123, %v350
    %352 = vmatmul.bf16.gmra.mxu0 %v164
    %v353 = vpop.f32.mrf.mxu0
    %v354 = vadd.f32 %v123, %v353
    %v355 = vpop.f32.mrf.mxu0
    %v356 = vadd.f32 %v123, %v355
    %357 = vmatmul.bf16.gmra.mxu0 %v165
    %v358 = vpop.f32.mrf.mxu0
    %v359 = vadd.f32 %v123, %v358
    %v360 = vpop.f32.mrf.mxu0
    %v361 = vadd.f32 %v123, %v360
    %362 = vmatmul.bf16.gmra.mxu0 %v166
    %v363 = vpop.f32.mrf.mxu0
    %v364 = vadd.f32 %v123, %v363
    %v365 = vpop.f32.mrf.mxu0
    %v366 = vadd.f32 %v123, %v365
    %367 = vmatmul.bf16.gmra.mxu0 %v167
    %v368 = vpop.f32.mrf.mxu0
    %v369 = vadd.f32 %v123, %v368
    %v370 = vpop.f32.mrf.mxu0
    %v371 = vadd.f32 %v123, %v370
    %372 = vmatmul.bf16.gmra.mxu0 %v168
    %v373 = vpop.f32.mrf.mxu0
    %v374 = vadd.f32 %v123, %v373
    %v375 = vpop.f32.mrf.mxu0
    %v376 = vadd.f32 %v123, %v375
    %377 = vmatmul.bf16.gmra.mxu0 %v169
    %v378 = vpop.f32.mrf.mxu0
    %v379 = vadd.f32 %v123, %v378
    %v380 = vpop.f32.mrf.mxu0
    %v381 = vadd.f32 %v123, %v380
    %382 = vmatmul.bf16.gmra.mxu0 %v170
    %v383 = vpop.f32.mrf.mxu0
    %v384 = vadd.f32 %v123, %v383
    %v385 = vpop.f32.mrf.mxu0
    %v386 = vadd.f32 %v123, %v385
    %387 = vdwg.mxu0
    %388 = vmatpush.bf16.msra.mxu0 %v304
    %389 = vmatpush.bf16.msra.mxu0 %v300
    %390 = vmatpush.bf16.msra.mxu0 %v296
    %391 = vmatpush.bf16.msra.mxu0 %v292
    %392 = vmatpush.bf16.msra.mxu0 %v288
    %393 = vmatpush.bf16.msra.mxu0 %v284
    %394 = vmatpush.bf16.msra.mxu0 %v280
    %395 = vmatpush.bf16.msra.mxu0 %v276
    %396 = vmatmul.bf16.gmra.mxu0 %v163
    %v397 = vpop.f32.mrf.mxu0
    %v398 = vadd.f32 %v124, %v397
    %v399 = vpop.f32.mrf.mxu0
    %v400 = vadd.f32 %v124, %v399
    %401 = vmatmul.bf16.gmra.mxu0 %v164
    %v402 = vpop.f32.mrf.mxu0
    %v403 = vadd.f32 %v124, %v402
    %v404 = vpop.f32.mrf.mxu0
    %v405 = vadd.f32 %v124, %v404
    %406 = vmatmul.bf16.gmra.mxu0 %v165
    %v407 = vpop.f32.mrf.mxu0
    %v408 = vadd.f32 %v124, %v407
    %v409 = vpop.f32.mrf.mxu0
    %v410 = vadd.f32 %v124, %v409
    %411 = vmatmul.bf16.gmra.mxu0 %v166
    %v412 = vpop.f32.mrf.mxu0
    %v413 = vadd.f32 %v124, %v412
    %v414 = vpop.f32.mrf.mxu0
    %v415 = vadd.f32 %v124, %v414
    %416 = vmatmul.bf16.gmra.mxu0 %v167
    %v417 = vpop.f32.mrf.mxu0
    %v418 = vadd.f32 %v124, %v417
    %v419 = vpop.f32.mrf.mxu0
    %v420 = vadd.f32 %v124, %v419
    %421 = vmatmul.bf16.gmra.mxu0 %v168
    %v422 = vpop.f32.mrf.mxu0
    %v423 = vadd.f32 %v124, %v422
    %v424 = vpop.f32.mrf.mxu0
    %v425 = vadd.f32 %v124, %v424
    %426 = vmatmul.bf16.gmra.mxu0 %v169
    %v427 = vpop.f32.mrf.mxu0
    %v428 = vadd.f32 %v124, %v427
    %v429 = vpop.f32.mrf.mxu0
    %v430 = vadd.f32 %v124, %v429
    %431 = vmatmul.bf16.gmra.mxu0 %v170
    %v432 = vpop.f32.mrf.mxu0
    %v433 = vadd.f32 %v124, %v432
    %v434 = vpop.f32.mrf.mxu0
    %v435 = vadd.f32 %v124, %v434
    %436 = vdwg.mxu0
    %437 = vmatpush.bf16.msra.mxu0 %v305
    %438 = vmatpush.bf16.msra.mxu0 %v301
    %439 = vmatpush.bf16.msra.mxu0 %v297
    %440 = vmatpush.bf16.msra.mxu0 %v293
    %441 = vmatpush.bf16.msra.mxu0 %v289
    %442 = vmatpush.bf16.msra.mxu0 %v285
    %443 = vmatpush.bf16.msra.mxu0 %v281
    %444 = vmatpush.bf16.msra.mxu0 %v277
    %445 = vmatmul.bf16.gmra.mxu0 %v163
    %v446 = vpop.f32.mrf.mxu0
    %v447 = vadd.f32 %v125, %v446
    %v448 = vpop.f32.mrf.mxu0
    %v449 = vadd.f32 %v125, %v448
    %450 = vmatmul.bf16.gmra.mxu0 %v164
    %v451 = vpop.f32.mrf.mxu0
    %v452 = vadd.f32 %v125, %v451
    %v453 = vpop.f32.mrf.mxu0
    %v454 = vadd.f32 %v125, %v453
    %455 = vmatmul.bf16.gmra.mxu0 %v165
    %v456 = vpop.f32.mrf.mxu0
    %v457 = vadd.f32 %v125, %v456
    %v458 = vpop.f32.mrf.mxu0
    %v459 = vadd.f32 %v125, %v458
    %460 = vmatmul.bf16.gmra.mxu0 %v166
    %v461 = vpop.f32.mrf.mxu0
    %v462 = vadd.f32 %v125, %v461
    %v463 = vpop.f32.mrf.mxu0
    %v464 = vadd.f32 %v125, %v463
    %465 = vmatmul.bf16.gmra.mxu0 %v167
    %v466 = vpop.f32.mrf.mxu0
    %v467 = vadd.f32 %v125, %v466
    %v468 = vpop.f32.mrf.mxu0
    %v469 = vadd.f32 %v125, %v468
    %470 = vmatmul.bf16.gmra.mxu0 %v168
    %v471 = vpop.f32.mrf.mxu0
    %v472 = vadd.f32 %v125, %v471
    %v473 = vpop.f32.mrf.mxu0
    %v474 = vadd.f32 %v125, %v473
    %475 = vmatmul.bf16.gmra.mxu0 %v169
    %v476 = vpop.f32.mrf.mxu0
    %v477 = vadd.f32 %v125, %v476
    %v478 = vpop.f32.mrf.mxu0
    %v479 = vadd.f32 %v125, %v478
    %480 = vmatmul.bf16.gmra.mxu0 %v170
    %v481 = vpop.f32.mrf.mxu0
    %v482 = vadd.f32 %v125, %v481
    %v483 = vpop.f32.mrf.mxu0
    %v484 = vadd.f32 %v125, %v483
    %485 = vdwg.mxu0
    %486 = vmatpush.bf16.msra.mxu0 %v306
    %487 = vmatpush.bf16.msra.mxu0 %v302
    %488 = vmatpush.bf16.msra.mxu0 %v298
    %489 = vmatpush.bf16.msra.mxu0 %v294
    %490 = vmatpush.bf16.msra.mxu0 %v290
    %491 = vmatpush.bf16.msra.mxu0 %v286
    %492 = vmatpush.bf16.msra.mxu0 %v282
    %493 = vmatpush.bf16.msra.mxu0 %v278
    %494 = vmatmul.bf16.gmra.mxu0 %v163
    %v495 = vpop.f32.mrf.mxu0
    %v496 = vadd.f32 %v126, %v495
    %v497 = vpop.f32.mrf.mxu0
    %v498 = vadd.f32 %v126, %v497
    %499 = vmatmul.bf16.gmra.mxu0 %v164
    %v500 = vpop.f32.mrf.mxu0
    %v501 = vadd.f32 %v126, %v500
    %v502 = vpop.f32.mrf.mxu0
    %v503 = vadd.f32 %v126, %v502
    %504 = vmatmul.bf16.gmra.mxu0 %v165
    %v505 = vpop.f32.mrf.mxu0
    %v506 = vadd.f32 %v126, %v505
    %v507 = vpop.f32.mrf.mxu0
    %v508 = vadd.f32 %v126, %v507
    %509 = vmatmul.bf16.gmra.mxu0 %v166
    %v510 = vpop.f32.mrf.mxu0
    %v511 = vadd.f32 %v126, %v510
    %v512 = vpop.f32.mrf.mxu0
    %v513 = vadd.f32 %v126, %v512
    %514 = vmatmul.bf16.gmra.mxu0 %v167
    %v515 = vpop.f32.mrf.mxu0
    %v516 = vadd.f32 %v126, %v515
    %v517 = vpop.f32.mrf.mxu0
    %v518 = vadd.f32 %v126, %v517
    %519 = vmatmul.bf16.gmra.mxu0 %v168
    %v520 = vpop.f32.mrf.mxu0
    %v521 = vadd.f32 %v126, %v520
    %v522 = vpop.f32.mrf.mxu0
    %v523 = vadd.f32 %v126, %v522
    %524 = vmatmul.bf16.gmra.mxu0 %v169
    %v525 = vpop.f32.mrf.mxu0
    %v526 = vadd.f32 %v126, %v525
    %v527 = vpop.f32.mrf.mxu0
    %v528 = vadd.f32 %v126, %v527
    %529 = vmatmul.bf16.gmra.mxu0 %v170
    %v530 = vpop.f32.mrf.mxu0
    %v531 = vadd.f32 %v126, %v530
    %v532 = vpop.f32.mrf.mxu0
    %v533 = vadd.f32 %v126, %v532
    %534 = vdwg.mxu0
    %v535 = vmax.f32 %v349, 0.0
    %v536 = vmax.f32 %v398, 0.0
    %v537 = vmax.f32 %v447, 0.0
    %v538 = vmax.f32 %v496, 0.0
    %v539 = vmax.f32 %v351, 0.0
    %v540 = vmax.f32 %v400, 0.0
    %v541 = vmax.f32 %v449, 0.0
    %v542 = vmax.f32 %v498, 0.0
    %v543 = vmax.f32 %v354, 0.0
    %v544 = vmax.f32 %v403, 0.0
    %v545 = vmax.f32 %v452, 0.0
    %v546 = vmax.f32 %v501, 0.0
    %v547 = vmax.f32 %v356, 0.0
    %v548 = vmax.f32 %v405, 0.0
    %v549 = vmax.f32 %v454, 0.0
    %v550 = vmax.f32 %v503, 0.0
    %v551 = vmax.f32 %v359, 0.0
    %v552 = vmax.f32 %v408, 0.0
    %v553 = vmax.f32 %v457, 0.0
    %v554 = vmax.f32 %v506, 0.0
    %v555 = vmax.f32 %v361, 0.0
    %v556 = vmax.f32 %v410, 0.0
    %v557 = vmax.f32 %v459, 0.0
    %v558 = vmax.f32 %v508, 0.0
    %v559 = vmax.f32 %v364, 0.0
    %v560 = vmax.f32 %v413, 0.0
    %v561 = vmax.f32 %v462, 0.0
    %v562 = vmax.f32 %v511, 0.0
    %v563 = vmax.f32 %v366, 0.0
    %v564 = vmax.f32 %v415, 0.0
    %v565 = vmax.f32 %v464, 0.0
    %v566 = vmax.f32 %v513, 0.0
    %v567 = vmax.f32 %v369, 0.0
    %v568 = vmax.f32 %v418, 0.0
    %v569 = vmax.f32 %v467, 0.0
    %v570 = vmax.f32 %v516, 0.0
    %v571 = vmax.f32 %v371, 0.0
    %v572 = vmax.f32 %v420, 0.0
    %v573 = vmax.f32 %v469, 0.0
    %v574 = vmax.f32 %v518, 0.0
    %v575 = vmax.f32 %v374, 0.0
    %v576 = vmax.f32 %v423, 0.0
    %v577 = vmax.f32 %v472, 0.0
    %v578 = vmax.f32 %v521, 0.0
    %v579 = vmax.f32 %v376, 0.0
    %v580 = vmax.f32 %v425, 0.0
    %v581 = vmax.f32 %v474, 0.0
    %v582 = vmax.f32 %v523, 0.0
    %v583 = vmax.f32 %v379, 0.0
    %v584 = vmax.f32 %v428, 0.0
    %v585 = vmax.f32 %v477, 0.0
    %v586 = vmax.f32 %v526, 0.0
    %v587 = vmax.f32 %v381, 0.0
    %v588 = vmax.f32 %v430, 0.0
    %v589 = vmax.f32 %v479, 0.0
    %v590 = vmax.f32 %v528, 0.0
    %v591 = vmax.f32 %v384, 0.0
    %v592 = vmax.f32 %v433, 0.0
    %v593 = vmax.f32 %v482, 0.0
    %v594 = vmax.f32 %v531, 0.0
    %v595 = vmax.f32 %v386, 0.0
    %v596 = vmax.f32 %v435, 0.0
    %v597 = vmax.f32 %v484, 0.0
    %v598 = vmax.f32 %v533, 0.0
    %v599 = vpack.c.bf16 %v539, %v535
    %v600 = vpack.c.bf16 %v540, %v536
    %v601 = vpack.c.bf16 %v541, %v537
    %v602 = vpack.c.bf16 %v542, %v538
    %v603 = vpack.c.bf16 %v547, %v543
    %v604 = vpack.c.bf16 %v548, %v544
    %v605 = vpack.c.bf16 %v549, %v545
    %v606 = vpack.c.bf16 %v550, %v546
    %v607 = vpack.c.bf16 %v555, %v551
    %v608 = vpack.c.bf16 %v556, %v552
    %v609 = vpack.c.bf16 %v557, %v553
    %v610 = vpack.c.bf16 %v558, %v554
    %v611 = vpack.c.bf16 %v563, %v559
    %v612 = vpack.c.bf16 %v564, %v560
    %v613 = vpack.c.bf16 %v565, %v561
    %v614 = vpack.c.bf16 %v566, %v562
    %v615 = vpack.c.bf16 %v571, %v567
    %v616 = vpack.c.bf16 %v572, %v568
    %v617 = vpack.c.bf16 %v573, %v569
    %v618 = vpack.c.bf16 %v574, %v570
    %v619 = vpack.c.bf16 %v579, %v575
    %v620 = vpack.c.bf16 %v580, %v576
    %v621 = vpack.c.bf16 %v581, %v577
    %v622 = vpack.c.bf16 %v582, %v578
    %v623 = vpack.c.bf16 %v587, %v583
    %v624 = vpack.c.bf16 %v588, %v584
    %v625 = vpack.c.bf16 %v589, %v585
    %v626 = vpack.c.bf16 %v590, %v586
    %v627 = vpack.c.bf16 %v595, %v591
    %v628 = vpack.c.bf16 %v596, %v592
    %v629 = vpack.c.bf16 %v597, %v593
    %v630 = vpack.c.bf16 %v598, %v594
    %v631 = vld [vmem:[#allocation4] sm:$0xff]
    %v632 = vld [vmem:[#allocation4 + $0x8] sm:$0xff]
    %v633 = vld [vmem:[#allocation4 + $0x10] sm:$0xff]
    %v634 = vld [vmem:[#allocation4 + $0x18] sm:$0xff]
    %v635 = vld [vmem:[#allocation4 + $0x20] sm:$0xff]
    %v636 = vld [vmem:[#allocation4 + $0x28] sm:$0xff]
    %v637 = vld [vmem:[#allocation4 + $0x30] sm:$0xff]
    %v638 = vld [vmem:[#allocation4 + $0x38] sm:$0xff]
    %v639 = vld [vmem:[#allocation4 + $0x40] sm:$0xff]
    %v640 = vld [vmem:[#allocation4 + $0x48] sm:$0xff]
    %v641 = vld [vmem:[#allocation4 + $0x50] sm:$0xff]
    %v642 = vld [vmem:[#allocation4 + $0x58] sm:$0xff]
    %v643 = vld [vmem:[#allocation4 + $0x60] sm:$0xff]
    %v644 = vld [vmem:[#allocation4 + $0x68] sm:$0xff]
    %v645 = vld [vmem:[#allocation4 + $0x70] sm:$0xff]
    %v646 = vld [vmem:[#allocation4 + $0x78] sm:$0xff]
    %v647 = vld [vmem:[#allocation4 + $0x80] sm:$0xff]
    %v648 = vld [vmem:[#allocation4 + $0x88] sm:$0xff]
    %v649 = vld [vmem:[#allocation4 + $0x90] sm:$0xff]
    %v650 = vld [vmem:[#allocation4 + $0x98] sm:$0xff]
    %v651 = vld [vmem:[#allocation4 + $0xa0] sm:$0xff]
    %v652 = vld [vmem:[#allocation4 + $0xa8] sm:$0xff]
    %v653 = vld [vmem:[#allocation4 + $0xb0] sm:$0xff]
    %v654 = vld [vmem:[#allocation4 + $0xb8] sm:$0xff]
    %v655 = vld [vmem:[#allocation4 + $0xc0] sm:$0xff]
    %v656 = vld [vmem:[#allocation4 + $0xc8] sm:$0xff]
    %v657 = vld [vmem:[#allocation4 + $0xd0] sm:$0xff]
    %v658 = vld [vmem:[#allocation4 + $0xd8] sm:$0xff]
    %v659 = vld [vmem:[#allocation4 + $0xe0] sm:$0xff]
    %v660 = vld [vmem:[#allocation4 + $0xe8] sm:$0xff]
    %v661 = vld [vmem:[#allocation4 + $0xf0] sm:$0xff]
    %v662 = vld [vmem:[#allocation4 + $0xf8] sm:$0xff]
    %v663 = vld [vmem:[#allocation4 + $0x100] sm:$0xff]
    %v664 = vld [vmem:[#allocation4 + $0x108] sm:$0xff]
    %v665 = vld [vmem:[#allocation4 + $0x110] sm:$0xff]
    %v666 = vld [vmem:[#allocation4 + $0x118] sm:$0xff]
    %v667 = vld [vmem:[#allocation4 + $0x120] sm:$0xff]
    %v668 = vld [vmem:[#allocation4 + $0x128] sm:$0xff]
    %v669 = vld [vmem:[#allocation4 + $0x130] sm:$0xff]
    %v670 = vld [vmem:[#allocation4 + $0x138] sm:$0xff]
    %v671 = vld [vmem:[#allocation4 + $0x140] sm:$0xff]
    %v672 = vld [vmem:[#allocation4 + $0x148] sm:$0xff]
    %v673 = vld [vmem:[#allocation4 + $0x150] sm:$0xff]
    %v674 = vld [vmem:[#allocation4 + $0x158] sm:$0xff]
    %v675 = vld [vmem:[#allocation4 + $0x160] sm:$0xff]
    %v676 = vld [vmem:[#allocation4 + $0x168] sm:$0xff]
    %v677 = vld [vmem:[#allocation4 + $0x170] sm:$0xff]
    %v678 = vld [vmem:[#allocation4 + $0x178] sm:$0xff]
    %v679 = vld [vmem:[#allocation4 + $0x180] sm:$0xff]
    %v680 = vld [vmem:[#allocation4 + $0x188] sm:$0xff]
    %v681 = vld [vmem:[#allocation4 + $0x190] sm:$0xff]
    %v682 = vld [vmem:[#allocation4 + $0x198] sm:$0xff]
    %v683 = vld [vmem:[#allocation4 + $0x1a0] sm:$0xff]
    %v684 = vld [vmem:[#allocation4 + $0x1a8] sm:$0xff]
    %v685 = vld [vmem:[#allocation4 + $0x1b0] sm:$0xff]
    %v686 = vld [vmem:[#allocation4 + $0x1b8] sm:$0xff]
    %v687 = vld [vmem:[#allocation4 + $0x1c0] sm:$0xff]
    %v688 = vld [vmem:[#allocation4 + $0x1c8] sm:$0xff]
    %v689 = vld [vmem:[#allocation4 + $0x1d0] sm:$0xff]
    %v690 = vld [vmem:[#allocation4 + $0x1d8] sm:$0xff]
    %v691 = vld [vmem:[#allocation4 + $0x1e0] sm:$0xff]
    %v692 = vld [vmem:[#allocation4 + $0x1e8] sm:$0xff]
    %v693 = vld [vmem:[#allocation4 + $0x1f0] sm:$0xff]
    %v694 = vld [vmem:[#allocation4 + $0x1f8] sm:$0xff]
    %v695 = vld [vmem:[#allocation4 + $0x200] sm:$0xff]
    %v696 = vld [vmem:[#allocation4 + $0x208] sm:$0xff]
    %v697 = vld [vmem:[#allocation4 + $0x210] sm:$0xff]
    %v698 = vld [vmem:[#allocation4 + $0x218] sm:$0xff]
    %v699 = vld [vmem:[#allocation4 + $0x220] sm:$0xff]
    %v700 = vld [vmem:[#allocation4 + $0x228] sm:$0xff]
    %v701 = vld [vmem:[#allocation4 + $0x230] sm:$0xff]
    %v702 = vld [vmem:[#allocation4 + $0x238] sm:$0xff]
    %v703 = vld [vmem:[#allocation4 + $0x240] sm:$0xff]
    %v704 = vld [vmem:[#allocation4 + $0x248] sm:$0xff]
    %v705 = vld [vmem:[#allocation4 + $0x250] sm:$0xff]
    %v706 = vld [vmem:[#allocation4 + $0x258] sm:$0xff]
    %v707 = vld [vmem:[#allocation4 + $0x260] sm:$0xff]
    %v708 = vld [vmem:[#allocation4 + $0x268] sm:$0xff]
    %v709 = vld [vmem:[#allocation4 + $0x270] sm:$0xff]
    %v710 = vld [vmem:[#allocation4 + $0x278] sm:$0xff]
    %v711 = vld [vmem:[#allocation4 + $0x280] sm:$0xff]
    %v712 = vld [vmem:[#allocation4 + $0x288] sm:$0xff]
    %v713 = vld [vmem:[#allocation4 + $0x290] sm:$0xff]
    %v714 = vld [vmem:[#allocation4 + $0x298] sm:$0xff]
    %v715 = vld [vmem:[#allocation4 + $0x2a0] sm:$0xff]
    %v716 = vld [vmem:[#allocation4 + $0x2a8] sm:$0xff]
    %v717 = vld [vmem:[#allocation4 + $0x2b0] sm:$0xff]
    %v718 = vld [vmem:[#allocation4 + $0x2b8] sm:$0xff]
    %v719 = vld [vmem:[#allocation4 + $0x2c0] sm:$0xff]
    %v720 = vld [vmem:[#allocation4 + $0x2c8] sm:$0xff]
    %v721 = vld [vmem:[#allocation4 + $0x2d0] sm:$0xff]
    %v722 = vld [vmem:[#allocation4 + $0x2d8] sm:$0xff]
    %v723 = vld [vmem:[#allocation4 + $0x2e0] sm:$0xff]
    %v724 = vld [vmem:[#allocation4 + $0x2e8] sm:$0xff]
    %v725 = vld [vmem:[#allocation4 + $0x2f0] sm:$0xff]
    %v726 = vld [vmem:[#allocation4 + $0x2f8] sm:$0xff]
    %v727 = vld [vmem:[#allocation4 + $0x300] sm:$0xff]
    %v728 = vld [vmem:[#allocation4 + $0x308] sm:$0xff]
    %v729 = vld [vmem:[#allocation4 + $0x310] sm:$0xff]
    %v730 = vld [vmem:[#allocation4 + $0x318] sm:$0xff]
    %v731 = vld [vmem:[#allocation4 + $0x320] sm:$0xff]
    %v732 = vld [vmem:[#allocation4 + $0x328] sm:$0xff]
    %v733 = vld [vmem:[#allocation4 + $0x330] sm:$0xff]
    %v734 = vld [vmem:[#allocation4 + $0x338] sm:$0xff]
    %v735 = vld [vmem:[#allocation4 + $0x340] sm:$0xff]
    %v736 = vld [vmem:[#allocation4 + $0x348] sm:$0xff]
    %v737 = vld [vmem:[#allocation4 + $0x350] sm:$0xff]
    %v738 = vld [vmem:[#allocation4 + $0x358] sm:$0xff]
    %v739 = vld [vmem:[#allocation4 + $0x360] sm:$0xff]
    %v740 = vld [vmem:[#allocation4 + $0x368] sm:$0xff]
    %v741 = vld [vmem:[#allocation4 + $0x370] sm:$0xff]
    %v742 = vld [vmem:[#allocation4 + $0x378] sm:$0xff]
    %v743 = vld [vmem:[#allocation4 + $0x380] sm:$0xff]
    %v744 = vld [vmem:[#allocation4 + $0x388] sm:$0xff]
    %v745 = vld [vmem:[#allocation4 + $0x390] sm:$0xff]
    %v746 = vld [vmem:[#allocation4 + $0x398] sm:$0xff]
    %v747 = vld [vmem:[#allocation4 + $0x3a0] sm:$0xff]
    %v748 = vld [vmem:[#allocation4 + $0x3a8] sm:$0xff]
    %v749 = vld [vmem:[#allocation4 + $0x3b0] sm:$0xff]
    %v750 = vld [vmem:[#allocation4 + $0x3b8] sm:$0xff]
    %v751 = vld [vmem:[#allocation4 + $0x3c0] sm:$0xff]
    %v752 = vld [vmem:[#allocation4 + $0x3c8] sm:$0xff]
    %v753 = vld [vmem:[#allocation4 + $0x3d0] sm:$0xff]
    %v754 = vld [vmem:[#allocation4 + $0x3d8] sm:$0xff]
    %v755 = vld [vmem:[#allocation4 + $0x3e0] sm:$0xff]
    %v756 = vld [vmem:[#allocation4 + $0x3e8] sm:$0xff]
    %v757 = vld [vmem:[#allocation4 + $0x3f0] sm:$0xff]
    %v758 = vld [vmem:[#allocation4 + $0x3f8] sm:$0xff]
    %v759 = vld [vmem:[%s4] sm:$0xf]
    %v761 = vperm.slane %v759, 0
    %v762 = vperm.slane %v759, 1
    %v763 = vperm.slane %v759, 2
    %v764 = vperm.slane %v759, 3
    %v897 = vunpack.c.l.b16 %v631
    %v898 = vunpack.c.h.b16 %v631
    %v899 = vunpack.c.l.b16 %v632
    %v900 = vunpack.c.h.b16 %v632
    %v901 = vunpack.c.l.b16 %v633
    %v902 = vunpack.c.h.b16 %v633
    %v903 = vunpack.c.l.b16 %v634
    %v904 = vunpack.c.h.b16 %v634
    %v905 = vunpack.c.l.b16 %v635
    %v906 = vunpack.c.h.b16 %v635
    %v907 = vunpack.c.l.b16 %v636
    %v908 = vunpack.c.h.b16 %v636
    %v909 = vunpack.c.l.b16 %v637
    %v910 = vunpack.c.h.b16 %v637
    %v911 = vunpack.c.l.b16 %v638
    %v912 = vunpack.c.h.b16 %v638
    %v913 = vunpack.c.l.b16 %v639
    %v914 = vunpack.c.h.b16 %v639
    %v915 = vunpack.c.l.b16 %v640
    %v916 = vunpack.c.h.b16 %v640
    %v917 = vunpack.c.l.b16 %v641
    %v918 = vunpack.c.h.b16 %v641
    %v919 = vunpack.c.l.b16 %v642
    %v920 = vunpack.c.h.b16 %v642
    %v921 = vunpack.c.l.b16 %v643
    %v922 = vunpack.c.h.b16 %v643
    %v923 = vunpack.c.l.b16 %v644
    %v924 = vunpack.c.h.b16 %v644
    %v925 = vunpack.c.l.b16 %v645
    %v926 = vunpack.c.h.b16 %v645
    %v927 = vunpack.c.l.b16 %v646
    %v928 = vunpack.c.h.b16 %v646
    %v929 = vunpack.c.l.b16 %v647
    %v930 = vunpack.c.h.b16 %v647
    %v931 = vunpack.c.l.b16 %v648
    %v932 = vunpack.c.h.b16 %v648
    %v933 = vunpack.c.l.b16 %v649
    %v934 = vunpack.c.h.b16 %v649
    %v935 = vunpack.c.l.b16 %v650
    %v936 = vunpack.c.h.b16 %v650
    %v937 = vunpack.c.l.b16 %v651
    %v938 = vunpack.c.h.b16 %v651
    %v939 = vunpack.c.l.b16 %v652
    %v940 = vunpack.c.h.b16 %v652
    %v941 = vunpack.c.l.b16 %v653
    %v942 = vunpack.c.h.b16 %v653
    %v943 = vunpack.c.l.b16 %v654
    %v944 = vunpack.c.h.b16 %v654
    %v945 = vunpack.c.l.b16 %v655
    %v946 = vunpack.c.h.b16 %v655
    %v947 = vunpack.c.l.b16 %v656
    %v948 = vunpack.c.h.b16 %v656
    %v949 = vunpack.c.l.b16 %v657
    %v950 = vunpack.c.h.b16 %v657
    %v951 = vunpack.c.l.b16 %v658
    %v952 = vunpack.c.h.b16 %v658
    %v953 = vunpack.c.l.b16 %v659
    %v954 = vunpack.c.h.b16 %v659
    %v955 = vunpack.c.l.b16 %v660
    %v956 = vunpack.c.h.b16 %v660
    %v957 = vunpack.c.l.b16 %v661
    %v958 = vunpack.c.h.b16 %v661
    %v959 = vunpack.c.l.b16 %v662
    %v960 = vunpack.c.h.b16 %v662
    %v961 = vunpack.c.l.b16 %v663
    %v962 = vunpack.c.h.b16 %v663
    %v963 = vunpack.c.l.b16 %v664
    %v964 = vunpack.c.h.b16 %v664
    %v965 = vunpack.c.l.b16 %v665
    %v966 = vunpack.c.h.b16 %v665
    %v967 = vunpack.c.l.b16 %v666
    %v968 = vunpack.c.h.b16 %v666
    %v969 = vunpack.c.l.b16 %v667
    %v970 = vunpack.c.h.b16 %v667
    %v971 = vunpack.c.l.b16 %v668
    %v972 = vunpack.c.h.b16 %v668
    %v973 = vunpack.c.l.b16 %v669
    %v974 = vunpack.c.h.b16 %v669
    %v975 = vunpack.c.l.b16 %v670
    %v976 = vunpack.c.h.b16 %v670
    %v977 = vunpack.c.l.b16 %v671
    %v978 = vunpack.c.h.b16 %v671
    %v979 = vunpack.c.l.b16 %v672
    %v980 = vunpack.c.h.b16 %v672
    %v981 = vunpack.c.l.b16 %v673
    %v982 = vunpack.c.h.b16 %v673
    %v983 = vunpack.c.l.b16 %v674
    %v984 = vunpack.c.h.b16 %v674
    %v985 = vunpack.c.l.b16 %v675
    %v986 = vunpack.c.h.b16 %v675
    %v987 = vunpack.c.l.b16 %v676
    %v988 = vunpack.c.h.b16 %v676
    %v989 = vunpack.c.l.b16 %v677
    %v990 = vunpack.c.h.b16 %v677
    %v991 = vunpack.c.l.b16 %v678
    %v992 = vunpack.c.h.b16 %v678
    %v993 = vunpack.c.l.b16 %v679
    %v994 = vunpack.c.h.b16 %v679
    %v995 = vunpack.c.l.b16 %v680
    %v996 = vunpack.c.h.b16 %v680
    %v997 = vunpack.c.l.b16 %v681
    %v998 = vunpack.c.h.b16 %v681
    %v999 = vunpack.c.l.b16 %v682
    %v1000 = vunpack.c.h.b16 %v682
    %v1001 = vunpack.c.l.b16 %v683
    %v1002 = vunpack.c.h.b16 %v683
    %v1003 = vunpack.c.l.b16 %v684
    %v1004 = vunpack.c.h.b16 %v684
    %v1005 = vunpack.c.l.b16 %v685
    %v1006 = vunpack.c.h.b16 %v685
    %v1007 = vunpack.c.l.b16 %v686
    %v1008 = vunpack.c.h.b16 %v686
    %v1009 = vunpack.c.l.b16 %v687
    %v1010 = vunpack.c.h.b16 %v687
    %v1011 = vunpack.c.l.b16 %v688
    %v1012 = vunpack.c.h.b16 %v688
    %v1013 = vunpack.c.l.b16 %v689
    %v1014 = vunpack.c.h.b16 %v689
    %v1015 = vunpack.c.l.b16 %v690
    %v1016 = vunpack.c.h.b16 %v690
    %v1017 = vunpack.c.l.b16 %v691
    %v1018 = vunpack.c.h.b16 %v691
    %v1019 = vunpack.c.l.b16 %v692
    %v1020 = vunpack.c.h.b16 %v692
    %v1021 = vunpack.c.l.b16 %v693
    %v1022 = vunpack.c.h.b16 %v693
    %v1023 = vunpack.c.l.b16 %v694
    %v1024 = vunpack.c.h.b16 %v694
    %v1025 = vunpack.c.l.b16 %v695
    %v1026 = vunpack.c.h.b16 %v695
    %v1027 = vunpack.c.l.b16 %v696
    %v1028 = vunpack.c.h.b16 %v696
    %v1029 = vunpack.c.l.b16 %v697
    %v1030 = vunpack.c.h.b16 %v697
    %v1031 = vunpack.c.l.b16 %v698
    %v1032 = vunpack.c.h.b16 %v698
    %v1033 = vunpack.c.l.b16 %v699
    %v1034 = vunpack.c.h.b16 %v699
    %v1035 = vunpack.c.l.b16 %v700
    %v1036 = vunpack.c.h.b16 %v700
    %v1037 = vunpack.c.l.b16 %v701
    %v1038 = vunpack.c.h.b16 %v701
    %v1039 = vunpack.c.l.b16 %v702
    %v1040 = vunpack.c.h.b16 %v702
    %v1041 = vunpack.c.l.b16 %v703
    %v1042 = vunpack.c.h.b16 %v703
    %v1043 = vunpack.c.l.b16 %v704
    %v1044 = vunpack.c.h.b16 %v704
    %v1045 = vunpack.c.l.b16 %v705
    %v1046 = vunpack.c.h.b16 %v705
    %v1047 = vunpack.c.l.b16 %v706
    %v1048 = vunpack.c.h.b16 %v706
    %v1049 = vunpack.c.l.b16 %v707
    %v1050 = vunpack.c.h.b16 %v707
    %v1051 = vunpack.c.l.b16 %v708
    %v1052 = vunpack.c.h.b16 %v708
    %v1053 = vunpack.c.l.b16 %v709
    %v1054 = vunpack.c.h.b16 %v709
    %v1055 = vunpack.c.l.b16 %v710
    %v1056 = vunpack.c.h.b16 %v710
    %v1057 = vunpack.c.l.b16 %v711
    %v1058 = vunpack.c.h.b16 %v711
    %v1059 = vunpack.c.l.b16 %v712
    %v1060 = vunpack.c.h.b16 %v712
    %v1061 = vunpack.c.l.b16 %v713
    %v1062 = vunpack.c.h.b16 %v713
    %v1063 = vunpack.c.l.b16 %v714
    %v1064 = vunpack.c.h.b16 %v714
    %v1065 = vunpack.c.l.b16 %v715
    %v1066 = vunpack.c.h.b16 %v715
    %v1067 = vunpack.c.l.b16 %v716
    %v1068 = vunpack.c.h.b16 %v716
    %v1069 = vunpack.c.l.b16 %v717
    %v1070 = vunpack.c.h.b16 %v717
    %v1071 = vunpack.c.l.b16 %v718
    %v1072 = vunpack.c.h.b16 %v718
    %v1073 = vunpack.c.l.b16 %v719
    %v1074 = vunpack.c.h.b16 %v719
    %v1075 = vunpack.c.l.b16 %v720
    %v1076 = vunpack.c.h.b16 %v720
    %v1077 = vunpack.c.l.b16 %v721
    %v1078 = vunpack.c.h.b16 %v721
    %v1079 = vunpack.c.l.b16 %v722
    %v1080 = vunpack.c.h.b16 %v722
    %v1081 = vunpack.c.l.b16 %v723
    %v1082 = vunpack.c.h.b16 %v723
    %v1083 = vunpack.c.l.b16 %v724
    %v1084 = vunpack.c.h.b16 %v724
    %v1085 = vunpack.c.l.b16 %v725
    %v1086 = vunpack.c.h.b16 %v725
    %v1087 = vunpack.c.l.b16 %v726
    %v1088 = vunpack.c.h.b16 %v726
    %v1089 = vunpack.c.l.b16 %v727
    %v1090 = vunpack.c.h.b16 %v727
    %v1091 = vunpack.c.l.b16 %v728
    %v1092 = vunpack.c.h.b16 %v728
    %v1093 = vunpack.c.l.b16 %v729
    %v1094 = vunpack.c.h.b16 %v729
    %v1095 = vunpack.c.l.b16 %v730
    %v1096 = vunpack.c.h.b16 %v730
    %v1097 = vunpack.c.l.b16 %v731
    %v1098 = vunpack.c.h.b16 %v731
    %v1099 = vunpack.c.l.b16 %v732
    %v1100 = vunpack.c.h.b16 %v732
    %v1101 = vunpack.c.l.b16 %v733
    %v1102 = vunpack.c.h.b16 %v733
    %v1103 = vunpack.c.l.b16 %v734
    %v1104 = vunpack.c.h.b16 %v734
    %v1105 = vunpack.c.l.b16 %v735
    %v1106 = vunpack.c.h.b16 %v735
    %v1107 = vunpack.c.l.b16 %v736
    %v1108 = vunpack.c.h.b16 %v736
    %v1109 = vunpack.c.l.b16 %v737
    %v1110 = vunpack.c.h.b16 %v737
    %v1111 = vunpack.c.l.b16 %v738
    %v1112 = vunpack.c.h.b16 %v738
    %v1113 = vunpack.c.l.b16 %v739
    %v1114 = vunpack.c.h.b16 %v739
    %v1115 = vunpack.c.l.b16 %v740
    %v1116 = vunpack.c.h.b16 %v740
    %v1117 = vunpack.c.l.b16 %v741
    %v1118 = vunpack.c.h.b16 %v741
    %v1119 = vunpack.c.l.b16 %v742
    %v1120 = vunpack.c.h.b16 %v742
    %v1121 = vunpack.c.l.b16 %v743
    %v1122 = vunpack.c.h.b16 %v743
    %v1123 = vunpack.c.l.b16 %v744
    %v1124 = vunpack.c.h.b16 %v744
    %v1125 = vunpack.c.l.b16 %v745
    %v1126 = vunpack.c.h.b16 %v745
    %v1127 = vunpack.c.l.b16 %v746
    %v1128 = vunpack.c.h.b16 %v746
    %v1129 = vunpack.c.l.b16 %v747
    %v1130 = vunpack.c.h.b16 %v747
    %v1131 = vunpack.c.l.b16 %v748
    %v1132 = vunpack.c.h.b16 %v748
    %v1133 = vunpack.c.l.b16 %v749
    %v1134 = vunpack.c.h.b16 %v749
    %v1135 = vunpack.c.l.b16 %v750
    %v1136 = vunpack.c.h.b16 %v750
    %v1137 = vunpack.c.l.b16 %v751
    %v1138 = vunpack.c.h.b16 %v751
    %v1139 = vunpack.c.l.b16 %v752
    %v1140 = vunpack.c.h.b16 %v752
    %v1141 = vunpack.c.l.b16 %v753
    %v1142 = vunpack.c.h.b16 %v753
    %v1143 = vunpack.c.l.b16 %v754
    %v1144 = vunpack.c.h.b16 %v754
    %v1145 = vunpack.c.l.b16 %v755
    %v1146 = vunpack.c.h.b16 %v755
    %v1147 = vunpack.c.l.b16 %v756
    %v1148 = vunpack.c.h.b16 %v756
    %v1149 = vunpack.c.l.b16 %v757
    %v1150 = vunpack.c.h.b16 %v757
    %v1151 = vunpack.c.l.b16 %v758
    %v1152 = vunpack.c.h.b16 %v758
    %v1153 = vpack.c.b16 %v901, %v897
    %v1154 = vpack.c.b16 %v902, %v898
    %v1155 = vpack.c.b16 %v903, %v899
    %v1156 = vpack.c.b16 %v904, %v900
    %v1157 = vpack.c.b16 %v909, %v905
    %v1158 = vpack.c.b16 %v910, %v906
    %v1159 = vpack.c.b16 %v911, %v907
    %v1160 = vpack.c.b16 %v912, %v908
    %v1161 = vpack.c.b16 %v917, %v913
    %v1162 = vpack.c.b16 %v918, %v914
    %v1163 = vpack.c.b16 %v919, %v915
    %v1164 = vpack.c.b16 %v920, %v916
    %v1165 = vpack.c.b16 %v925, %v921
    %v1166 = vpack.c.b16 %v926, %v922
    %v1167 = vpack.c.b16 %v927, %v923
    %v1168 = vpack.c.b16 %v928, %v924
    %v1169 = vpack.c.b16 %v933, %v929
    %v1170 = vpack.c.b16 %v934, %v930
    %v1171 = vpack.c.b16 %v935, %v931
    %v1172 = vpack.c.b16 %v936, %v932
    %v1173 = vpack.c.b16 %v941, %v937
    %v1174 = vpack.c.b16 %v942, %v938
    %v1175 = vpack.c.b16 %v943, %v939
    %v1176 = vpack.c.b16 %v944, %v940
    %v1177 = vpack.c.b16 %v949, %v945
    %v1178 = vpack.c.b16 %v950, %v946
    %v1179 = vpack.c.b16 %v951, %v947
    %v1180 = vpack.c.b16 %v952, %v948
    %v1181 = vpack.c.b16 %v957, %v953
    %v1182 = vpack.c.b16 %v958, %v954
    %v1183 = vpack.c.b16 %v959, %v955
    %v1184 = vpack.c.b16 %v960, %v956
    %v1185 = vpack.c.b16 %v965, %v961
    %v1186 = vpack.c.b16 %v966, %v962
    %v1187 = vpack.c.b16 %v967, %v963
    %v1188 = vpack.c.b16 %v968, %v964
    %v1189 = vpack.c.b16 %v973, %v969
    %v1190 = vpack.c.b16 %v974, %v970
    %v1191 = vpack.c.b16 %v975, %v971
    %v1192 = vpack.c.b16 %v976, %v972
    %v1193 = vpack.c.b16 %v981, %v977
    %v1194 = vpack.c.b16 %v982, %v978
    %v1195 = vpack.c.b16 %v983, %v979
    %v1196 = vpack.c.b16 %v984, %v980
    %v1197 = vpack.c.b16 %v989, %v985
    %v1198 = vpack.c.b16 %v990, %v986
    %v1199 = vpack.c.b16 %v991, %v987
    %v1200 = vpack.c.b16 %v992, %v988
    %v1201 = vpack.c.b16 %v997, %v993
    %v1202 = vpack.c.b16 %v998, %v994
    %v1203 = vpack.c.b16 %v999, %v995
    %v1204 = vpack.c.b16 %v1000, %v996
    %v1205 = vpack.c.b16 %v1005, %v1001
    %v1206 = vpack.c.b16 %v1006, %v1002
    %v1207 = vpack.c.b16 %v1007, %v1003
    %v1208 = vpack.c.b16 %v1008, %v1004
    %v1209 = vpack.c.b16 %v1013, %v1009
    %v1210 = vpack.c.b16 %v1014, %v1010
    %v1211 = vpack.c.b16 %v1015, %v1011
    %v1212 = vpack.c.b16 %v1016, %v1012
    %v1213 = vpack.c.b16 %v1021, %v1017
    %v1214 = vpack.c.b16 %v1022, %v1018
    %v1215 = vpack.c.b16 %v1023, %v1019
    %v1216 = vpack.c.b16 %v1024, %v1020
    %v1217 = vpack.c.b16 %v1029, %v1025
    %v1218 = vpack.c.b16 %v1030, %v1026
    %v1219 = vpack.c.b16 %v1031, %v1027
    %v1220 = vpack.c.b16 %v1032, %v1028
    %v1221 = vpack.c.b16 %v1037, %v1033
    %v1222 = vpack.c.b16 %v1038, %v1034
    %v1223 = vpack.c.b16 %v1039, %v1035
    %v1224 = vpack.c.b16 %v1040, %v1036
    %v1225 = vpack.c.b16 %v1045, %v1041
    %v1226 = vpack.c.b16 %v1046, %v1042
    %v1227 = vpack.c.b16 %v1047, %v1043
    %v1228 = vpack.c.b16 %v1048, %v1044
    %v1229 = vpack.c.b16 %v1053, %v1049
    %v1230 = vpack.c.b16 %v1054, %v1050
    %v1231 = vpack.c.b16 %v1055, %v1051
    %v1232 = vpack.c.b16 %v1056, %v1052
    %v1233 = vpack.c.b16 %v1061, %v1057
    %v1234 = vpack.c.b16 %v1062, %v1058
    %v1235 = vpack.c.b16 %v1063, %v1059
    %v1236 = vpack.c.b16 %v1064, %v1060
    %v1237 = vpack.c.b16 %v1069, %v1065
    %v1238 = vpack.c.b16 %v1070, %v1066
    %v1239 = vpack.c.b16 %v1071, %v1067
    %v1240 = vpack.c.b16 %v1072, %v1068
    %v1241 = vpack.c.b16 %v1077, %v1073
    %v1242 = vpack.c.b16 %v1078, %v1074
    %v1243 = vpack.c.b16 %v1079, %v1075
    %v1244 = vpack.c.b16 %v1080, %v1076
    %v1245 = vpack.c.b16 %v1085, %v1081
    %v1246 = vpack.c.b16 %v1086, %v1082
    %v1247 = vpack.c.b16 %v1087, %v1083
    %v1248 = vpack.c.b16 %v1088, %v1084
    %v1249 = vpack.c.b16 %v1093, %v1089
    %v1250 = vpack.c.b16 %v1094, %v1090
    %v1251 = vpack.c.b16 %v1095, %v1091
    %v1252 = vpack.c.b16 %v1096, %v1092
    %v1253 = vpack.c.b16 %v1101, %v1097
    %v1254 = vpack.c.b16 %v1102, %v1098
    %v1255 = vpack.c.b16 %v1103, %v1099
    %v1256 = vpack.c.b16 %v1104, %v1100
    %v1257 = vpack.c.b16 %v1109, %v1105
    %v1258 = vpack.c.b16 %v1110, %v1106
    %v1259 = vpack.c.b16 %v1111, %v1107
    %v1260 = vpack.c.b16 %v1112, %v1108
    %v1261 = vpack.c.b16 %v1117, %v1113
    %v1262 = vpack.c.b16 %v1118, %v1114
    %v1263 = vpack.c.b16 %v1119, %v1115
    %v1264 = vpack.c.b16 %v1120, %v1116
    %v1265 = vpack.c.b16 %v1125, %v1121
    %v1266 = vpack.c.b16 %v1126, %v1122
    %v1267 = vpack.c.b16 %v1127, %v1123
    %v1268 = vpack.c.b16 %v1128, %v1124
    %v1269 = vpack.c.b16 %v1133, %v1129
    %v1270 = vpack.c.b16 %v1134, %v1130
    %v1271 = vpack.c.b16 %v1135, %v1131
    %v1272 = vpack.c.b16 %v1136, %v1132
    %v1273 = vpack.c.b16 %v1141, %v1137
    %v1274 = vpack.c.b16 %v1142, %v1138
    %v1275 = vpack.c.b16 %v1143, %v1139
    %v1276 = vpack.c.b16 %v1144, %v1140
    %v1277 = vpack.c.b16 %v1149, %v1145
    %v1278 = vpack.c.b16 %v1150, %v1146
    %v1279 = vpack.c.b16 %v1151, %v1147
    %v1280 = vpack.c.b16 %v1152, %v1148
    %1409 = vmatpush.bf16.msra.mxu0 %v1181
    %1410 = vmatpush.bf16.msra.mxu0 %v1177
    %1411 = vmatpush.bf16.msra.mxu0 %v1173
    %1412 = vmatpush.bf16.msra.mxu0 %v1169
    %1413 = vmatpush.bf16.msra.mxu0 %v1165
    %1414 = vmatpush.bf16.msra.mxu0 %v1161
    %1415 = vmatpush.bf16.msra.mxu0 %v1157
    %1416 = vmatpush.bf16.msra.mxu0 %v1153
    %1417 = vmatmul.bf16.gmra.mxu0 %v599
    %v1418 = vpop.f32.mrf.mxu0
    %v1419 = vadd.f32 %v761, %v1418
    %v1420 = vpop.f32.mrf.mxu0
    %v1421 = vadd.f32 %v761, %v1420
    %1422 = vmatmul.bf16.gmra.mxu0 %v603
    %v1423 = vpop.f32.mrf.mxu0
    %v1424 = vadd.f32 %v761, %v1423
    %v1425 = vpop.f32.mrf.mxu0
    %v1426 = vadd.f32 %v761, %v1425
    %1427 = vmatmul.bf16.gmra.mxu0 %v607
    %v1428 = vpop.f32.mrf.mxu0
    %v1429 = vadd.f32 %v761, %v1428
    %v1430 = vpop.f32.mrf.mxu0
    %v1431 = vadd.f32 %v761, %v1430
    %1432 = vmatmul.bf16.gmra.mxu0 %v611
    %v1433 = vpop.f32.mrf.mxu0
    %v1434 = vadd.f32 %v761, %v1433
    %v1435 = vpop.f32.mrf.mxu0
    %v1436 = vadd.f32 %v761, %v1435
    %1437 = vmatmul.bf16.gmra.mxu0 %v615
    %v1438 = vpop.f32.mrf.mxu0
    %v1439 = vadd.f32 %v761, %v1438
    %v1440 = vpop.f32.mrf.mxu0
    %v1441 = vadd.f32 %v761, %v1440
    %1442 = vmatmul.bf16.gmra.mxu0 %v619
    %v1443 = vpop.f32.mrf.mxu0
    %v1444 = vadd.f32 %v761, %v1443
    %v1445 = vpop.f32.mrf.mxu0
    %v1446 = vadd.f32 %v761, %v1445
    %1447 = vmatmul.bf16.gmra.mxu0 %v623
    %v1448 = vpop.f32.mrf.mxu0
    %v1449 = vadd.f32 %v761, %v1448
    %v1450 = vpop.f32.mrf.mxu0
    %v1451 = vadd.f32 %v761, %v1450
    %1452 = vmatmul.bf16.gmra.mxu0 %v627
    %v1453 = vpop.f32.mrf.mxu0
    %v1454 = vadd.f32 %v761, %v1453
    %v1455 = vpop.f32.mrf.mxu0
    %v1456 = vadd.f32 %v761, %v1455
    %1457 = vdwg.mxu0
    %1458 = vmatpush.bf16.msra.mxu0 %v1213
    %1459 = vmatpush.bf16.msra.mxu0 %v1209
    %1460 = vmatpush.bf16.msra.mxu0 %v1205
    %1461 = vmatpush.bf16.msra.mxu0 %v1201
    %1462 = vmatpush.bf16.msra.mxu0 %v1197
    %1463 = vmatpush.bf16.msra.mxu0 %v1193
    %1464 = vmatpush.bf16.msra.mxu0 %v1189
    %1465 = vmatpush.bf16.msra.mxu0 %v1185
    %1466 = vmatmul.bf16.gmra.mxu0 %v600
    %v1467 = vpop.f32.mrf.mxu0
    %v1468 = vadd.f32 %v1419, %v1467
    %v1469 = vpop.f32.mrf.mxu0
    %v1470 = vadd.f32 %v1421, %v1469
    %1471 = vmatmul.bf16.gmra.mxu0 %v604
    %v1472 = vpop.f32.mrf.mxu0
    %v1473 = vadd.f32 %v1424, %v1472
    %v1474 = vpop.f32.mrf.mxu0
    %v1475 = vadd.f32 %v1426, %v1474
    %1476 = vmatmul.bf16.gmra.mxu0 %v608
    %v1477 = vpop.f32.mrf.mxu0
    %v1478 = vadd.f32 %v1429, %v1477
    %v1479 = vpop.f32.mrf.mxu0
    %v1480 = vadd.f32 %v1431, %v1479
    %1481 = vmatmul.bf16.gmra.mxu0 %v612
    %v1482 = vpop.f32.mrf.mxu0
    %v1483 = vadd.f32 %v1434, %v1482
    %v1484 = vpop.f32.mrf.mxu0
    %v1485 = vadd.f32 %v1436, %v1484
    %1486 = vmatmul.bf16.gmra.mxu0 %v616
    %v1487 = vpop.f32.mrf.mxu0
    %v1488 = vadd.f32 %v1439, %v1487
    %v1489 = vpop.f32.mrf.mxu0
    %v1490 = vadd.f32 %v1441, %v1489
    %1491 = vmatmul.bf16.gmra.mxu0 %v620
    %v1492 = vpop.f32.mrf.mxu0
    %v1493 = vadd.f32 %v1444, %v1492
    %v1494 = vpop.f32.mrf.mxu0
    %v1495 = vadd.f32 %v1446, %v1494
    %1496 = vmatmul.bf16.gmra.mxu0 %v624
    %v1497 = vpop.f32.mrf.mxu0
    %v1498 = vadd.f32 %v1449, %v1497
    %v1499 = vpop.f32.mrf.mxu0
    %v1500 = vadd.f32 %v1451, %v1499
    %1501 = vmatmul.bf16.gmra.mxu0 %v628
    %v1502 = vpop.f32.mrf.mxu0
    %v1503 = vadd.f32 %v1454, %v1502
    %v1504 = vpop.f32.mrf.mxu0
    %v1505 = vadd.f32 %v1456, %v1504
    %1506 = vdwg.mxu0
    %1507 = vmatpush.bf16.msra.mxu0 %v1245
    %1508 = vmatpush.bf16.msra.mxu0 %v1241
    %1509 = vmatpush.bf16.msra.mxu0 %v1237
    %1510 = vmatpush.bf16.msra.mxu0 %v1233
    %1511 = vmatpush.bf16.msra.mxu0 %v1229
    %1512 = vmatpush.bf16.msra.mxu0 %v1225
    %1513 = vmatpush.bf16.msra.mxu0 %v1221
    %1514 = vmatpush.bf16.msra.mxu0 %v1217
    %1515 = vmatmul.bf16.gmra.mxu0 %v601
    %v1516 = vpop.f32.mrf.mxu0
    %v1517 = vadd.f32 %v1468, %v1516
    %v1518 = vpop.f32.mrf.mxu0
    %v1519 = vadd.f32 %v1470, %v1518
    %1520 = vmatmul.bf16.gmra.mxu0 %v605
    %v1521 = vpop.f32.mrf.mxu0
    %v1522 = vadd.f32 %v1473, %v1521
    %v1523 = vpop.f32.mrf.mxu0
    %v1524 = vadd.f32 %v1475, %v1523
    %1525 = vmatmul.bf16.gmra.mxu0 %v609
    %v1526 = vpop.f32.mrf.mxu0
    %v1527 = vadd.f32 %v1478, %v1526
    %v1528 = vpop.f32.mrf.mxu0
    %v1529 = vadd.f32 %v1480, %v1528
    %1530 = vmatmul.bf16.gmra.mxu0 %v613
    %v1531 = vpop.f32.mrf.mxu0
    %v1532 = vadd.f32 %v1483, %v1531
    %v1533 = vpop.f32.mrf.mxu0
    %v1534 = vadd.f32 %v1485, %v1533
    %1535 = vmatmul.bf16.gmra.mxu0 %v617
    %v1536 = vpop.f32.mrf.mxu0
    %v1537 = vadd.f32 %v1488, %v1536
    %v1538 = vpop.f32.mrf.mxu0
    %v1539 = vadd.f32 %v1490, %v1538
    %1540 = vmatmul.bf16.gmra.mxu0 %v621
    %v1541 = vpop.f32.mrf.mxu0
    %v1542 = vadd.f32 %v1493, %v1541
    %v1543 = vpop.f32.mrf.mxu0
    %v1544 = vadd.f32 %v1495, %v1543
    %1545 = vmatmul.bf16.gmra.mxu0 %v625
    %v1546 = vpop.f32.mrf.mxu0
    %v1547 = vadd.f32 %v1498, %v1546
    %v1548 = vpop.f32.mrf.mxu0
    %v1549 = vadd.f32 %v1500, %v1548
    %1550 = vmatmul.bf16.gmra.mxu0 %v629
    %v1551 = vpop.f32.mrf.mxu0
    %v1552 = vadd.f32 %v1503, %v1551
    %v1553 = vpop.f32.mrf.mxu0
    %v1554 = vadd.f32 %v1505, %v1553
    %1555 = vdwg.mxu0
    %1556 = vmatpush.bf16.msra.mxu0 %v1277
    %1557 = vmatpush.bf16.msra.mxu0 %v1273
    %1558 = vmatpush.bf16.msra.mxu0 %v1269
    %1559 = vmatpush.bf16.msra.mxu0 %v1265
    %1560 = vmatpush.bf16.msra.mxu0 %v1261
    %1561 = vmatpush.bf16.msra.mxu0 %v1257
    %1562 = vmatpush.bf16.msra.mxu0 %v1253
    %1563 = vmatpush.bf16.msra.mxu0 %v1249
    %1564 = vmatmul.bf16.gmra.mxu0 %v602
    %v1565 = vpop.f32.mrf.mxu0
    %v1566 = vadd.f32 %v1517, %v1565
    %v1567 = vpop.f32.mrf.mxu0
    %v1568 = vadd.f32 %v1519, %v1567
    %1569 = vmatmul.bf16.gmra.mxu0 %v606
    %v1570 = vpop.f32.mrf.mxu0
    %v1571 = vadd.f32 %v1522, %v1570
    %v1572 = vpop.f32.mrf.mxu0
    %v1573 = vadd.f32 %v1524, %v1572
    %1574 = vmatmul.bf16.gmra.mxu0 %v610
    %v1575 = vpop.f32.mrf.mxu0
    %v1576 = vadd.f32 %v1527, %v1575
    %v1577 = vpop.f32.mrf.mxu0
    %v1578 = vadd.f32 %v1529, %v1577
    %1579 = vmatmul.bf16.gmra.mxu0 %v614
    %v1580 = vpop.f32.mrf.mxu0
    %v1581 = vadd.f32 %v1532, %v1580
    %v1582 = vpop.f32.mrf.mxu0
    %v1583 = vadd.f32 %v1534, %v1582
    %1584 = vmatmul.bf16.gmra.mxu0 %v618
    %v1585 = vpop.f32.mrf.mxu0
    %v1586 = vadd.f32 %v1537, %v1585
    %v1587 = vpop.f32.mrf.mxu0
    %v1588 = vadd.f32 %v1539, %v1587
    %1589 = vmatmul.bf16.gmra.mxu0 %v622
    %v1590 = vpop.f32.mrf.mxu0
    %v1591 = vadd.f32 %v1542, %v1590
    %v1592 = vpop.f32.mrf.mxu0
    %v1593 = vadd.f32 %v1544, %v1592
    %1594 = vmatmul.bf16.gmra.mxu0 %v626
    %v1595 = vpop.f32.mrf.mxu0
    %v1596 = vadd.f32 %v1547, %v1595
    %v1597 = vpop.f32.mrf.mxu0
    %v1598 = vadd.f32 %v1549, %v1597
    %1599 = vmatmul.bf16.gmra.mxu0 %v630
    %v1600 = vpop.f32.mrf.mxu0
    %v1601 = vadd.f32 %v1552, %v1600
    %v1602 = vpop.f32.mrf.mxu0
    %v1603 = vadd.f32 %v1554, %v1602
    %1604 = vdwg.mxu0
    %1605 = vmatpush.bf16.msra.mxu0 %v1182
    %1606 = vmatpush.bf16.msra.mxu0 %v1178
    %1607 = vmatpush.bf16.msra.mxu0 %v1174
    %1608 = vmatpush.bf16.msra.mxu0 %v1170
    %1609 = vmatpush.bf16.msra.mxu0 %v1166
    %1610 = vmatpush.bf16.msra.mxu0 %v1162
    %1611 = vmatpush.bf16.msra.mxu0 %v1158
    %1612 = vmatpush.bf16.msra.mxu0 %v1154
    %1613 = vmatmul.bf16.gmra.mxu0 %v599
    %v1614 = vpop.f32.mrf.mxu0
    %v1615 = vadd.f32 %v762, %v1614
    %v1616 = vpop.f32.mrf.mxu0
    %v1617 = vadd.f32 %v762, %v1616
    %1618 = vmatmul.bf16.gmra.mxu0 %v603
    %v1619 = vpop.f32.mrf.mxu0
    %v1620 = vadd.f32 %v762, %v1619
    %v1621 = vpop.f32.mrf.mxu0
    %v1622 = vadd.f32 %v762, %v1621
    %1623 = vmatmul.bf16.gmra.mxu0 %v607
    %v1624 = vpop.f32.mrf.mxu0
    %v1625 = vadd.f32 %v762, %v1624
    %v1626 = vpop.f32.mrf.mxu0
    %v1627 = vadd.f32 %v762, %v1626
    %1628 = vmatmul.bf16.gmra.mxu0 %v611
    %v1629 = vpop.f32.mrf.mxu0
    %v1630 = vadd.f32 %v762, %v1629
    %v1631 = vpop.f32.mrf.mxu0
    %v1632 = vadd.f32 %v762, %v1631
    %1633 = vmatmul.bf16.gmra.mxu0 %v615
    %v1634 = vpop.f32.mrf.mxu0
    %v1635 = vadd.f32 %v762, %v1634
    %v1636 = vpop.f32.mrf.mxu0
    %v1637 = vadd.f32 %v762, %v1636
    %1638 = vmatmul.bf16.gmra.mxu0 %v619
    %v1639 = vpop.f32.mrf.mxu0
    %v1640 = vadd.f32 %v762, %v1639
    %v1641 = vpop.f32.mrf.mxu0
    %v1642 = vadd.f32 %v762, %v1641
    %1643 = vmatmul.bf16.gmra.mxu0 %v623
    %v1644 = vpop.f32.mrf.mxu0
    %v1645 = vadd.f32 %v762, %v1644
    %v1646 = vpop.f32.mrf.mxu0
    %v1647 = vadd.f32 %v762, %v1646
    %1648 = vmatmul.bf16.gmra.mxu0 %v627
    %v1649 = vpop.f32.mrf.mxu0
    %v1650 = vadd.f32 %v762, %v1649
    %v1651 = vpop.f32.mrf.mxu0
    %v1652 = vadd.f32 %v762, %v1651
    %1653 = vdwg.mxu0
    %1654 = vmatpush.bf16.msra.mxu0 %v1214
    %1655 = vmatpush.bf16.msra.mxu0 %v1210
    %1656 = vmatpush.bf16.msra.mxu0 %v1206
    %1657 = vmatpush.bf16.msra.mxu0 %v1202
    %1658 = vmatpush.bf16.msra.mxu0 %v1198
    %1659 = vmatpush.bf16.msra.mxu0 %v1194
    %1660 = vmatpush.bf16.msra.mxu0 %v1190
    %1661 = vmatpush.bf16.msra.mxu0 %v1186
    %1662 = vmatmul.bf16.gmra.mxu0 %v600
    %v1663 = vpop.f32.mrf.mxu0
    %v1664 = vadd.f32 %v1615, %v1663
    %v1665 = vpop.f32.mrf.mxu0
    %v1666 = vadd.f32 %v1617, %v1665
    %1667 = vmatmul.bf16.gmra.mxu0 %v604
    %v1668 = vpop.f32.mrf.mxu0
    %v1669 = vadd.f32 %v1620, %v1668
    %v1670 = vpop.f32.mrf.mxu0
    %v1671 = vadd.f32 %v1622, %v1670
    %1672 = vmatmul.bf16.gmra.mxu0 %v608
    %v1673 = vpop.f32.mrf.mxu0
    %v1674 = vadd.f32 %v1625, %v1673
    %v1675 = vpop.f32.mrf.mxu0
    %v1676 = vadd.f32 %v1627, %v1675
    %1677 = vmatmul.bf16.gmra.mxu0 %v612
    %v1678 = vpop.f32.mrf.mxu0
    %v1679 = vadd.f32 %v1630, %v1678
    %v1680 = vpop.f32.mrf.mxu0
    %v1681 = vadd.f32 %v1632, %v1680
    %1682 = vmatmul.bf16.gmra.mxu0 %v616
    %v1683 = vpop.f32.mrf.mxu0
    %v1684 = vadd.f32 %v1635, %v1683
    %v1685 = vpop.f32.mrf.mxu0
    %v1686 = vadd.f32 %v1637, %v1685
    %1687 = vmatmul.bf16.gmra.mxu0 %v620
    %v1688 = vpop.f32.mrf.mxu0
    %v1689 = vadd.f32 %v1640, %v1688
    %v1690 = vpop.f32.mrf.mxu0
    %v1691 = vadd.f32 %v1642, %v1690
    %1692 = vmatmul.bf16.gmra.mxu0 %v624
    %v1693 = vpop.f32.mrf.mxu0
    %v1694 = vadd.f32 %v1645, %v1693
    %v1695 = vpop.f32.mrf.mxu0
    %v1696 = vadd.f32 %v1647, %v1695
    %1697 = vmatmul.bf16.gmra.mxu0 %v628
    %v1698 = vpop.f32.mrf.mxu0
    %v1699 = vadd.f32 %v1650, %v1698
    %v1700 = vpop.f32.mrf.mxu0
    %v1701 = vadd.f32 %v1652, %v1700
    %1702 = vdwg.mxu0
    %1703 = vmatpush.bf16.msra.mxu0 %v1246
    %1704 = vmatpush.bf16.msra.mxu0 %v1242
    %1705 = vmatpush.bf16.msra.mxu0 %v1238
    %1706 = vmatpush.bf16.msra.mxu0 %v1234
    %1707 = vmatpush.bf16.msra.mxu0 %v1230
    %1708 = vmatpush.bf16.msra.mxu0 %v1226
    %1709 = vmatpush.bf16.msra.mxu0 %v1222
    %1710 = vmatpush.bf16.msra.mxu0 %v1218
    %1711 = vmatmul.bf16.gmra.mxu0 %v601
    %v1712 = vpop.f32.mrf.mxu0
    %v1713 = vadd.f32 %v1664, %v1712
    %v1714 = vpop.f32.mrf.mxu0
    %v1715 = vadd.f32 %v1666, %v1714
    %1716 = vmatmul.bf16.gmra.mxu0 %v605
    %v1717 = vpop.f32.mrf.mxu0
    %v1718 = vadd.f32 %v1669, %v1717
    %v1719 = vpop.f32.mrf.mxu0
    %v1720 = vadd.f32 %v1671, %v1719
    %1721 = vmatmul.bf16.gmra.mxu0 %v609
    %v1722 = vpop.f32.mrf.mxu0
    %v1723 = vadd.f32 %v1674, %v1722
    %v1724 = vpop.f32.mrf.mxu0
    %v1725 = vadd.f32 %v1676, %v1724
    %1726 = vmatmul.bf16.gmra.mxu0 %v613
    %v1727 = vpop.f32.mrf.mxu0
    %v1728 = vadd.f32 %v1679, %v1727
    %v1729 = vpop.f32.mrf.mxu0
    %v1730 = vadd.f32 %v1681, %v1729
    %1731 = vmatmul.bf16.gmra.mxu0 %v617
    %v1732 = vpop.f32.mrf.mxu0
    %v1733 = vadd.f32 %v1684, %v1732
    %v1734 = vpop.f32.mrf.mxu0
    %v1735 = vadd.f32 %v1686, %v1734
    %1736 = vmatmul.bf16.gmra.mxu0 %v621
    %v1737 = vpop.f32.mrf.mxu0
    %v1738 = vadd.f32 %v1689, %v1737
    %v1739 = vpop.f32.mrf.mxu0
    %v1740 = vadd.f32 %v1691, %v1739
    %1741 = vmatmul.bf16.gmra.mxu0 %v625
    %v1742 = vpop.f32.mrf.mxu0
    %v1743 = vadd.f32 %v1694, %v1742
    %v1744 = vpop.f32.mrf.mxu0
    %v1745 = vadd.f32 %v1696, %v1744
    %1746 = vmatmul.bf16.gmra.mxu0 %v629
    %v1747 = vpop.f32.mrf.mxu0
    %v1748 = vadd.f32 %v1699, %v1747
    %v1749 = vpop.f32.mrf.mxu0
    %v1750 = vadd.f32 %v1701, %v1749
    %1751 = vdwg.mxu0
    %1752 = vmatpush.bf16.msra.mxu0 %v1278
    %1753 = vmatpush.bf16.msra.mxu0 %v1274
    %1754 = vmatpush.bf16.msra.mxu0 %v1270
    %1755 = vmatpush.bf16.msra.mxu0 %v1266
    %1756 = vmatpush.bf16.msra.mxu0 %v1262
    %1757 = vmatpush.bf16.msra.mxu0 %v1258
    %1758 = vmatpush.bf16.msra.mxu0 %v1254
    %1759 = vmatpush.bf16.msra.mxu0 %v1250
    %1760 = vmatmul.bf16.gmra.mxu0 %v602
    %v1761 = vpop.f32.mrf.mxu0
    %v1762 = vadd.f32 %v1713, %v1761
    %v1763 = vpop.f32.mrf.mxu0
    %v1764 = vadd.f32 %v1715, %v1763
    %1765 = vmatmul.bf16.gmra.mxu0 %v606
    %v1766 = vpop.f32.mrf.mxu0
    %v1767 = vadd.f32 %v1718, %v1766
    %v1768 = vpop.f32.mrf.mxu0
    %v1769 = vadd.f32 %v1720, %v1768
    %1770 = vmatmul.bf16.gmra.mxu0 %v610
    %v1771 = vpop.f32.mrf.mxu0
    %v1772 = vadd.f32 %v1723, %v1771
    %v1773 = vpop.f32.mrf.mxu0
    %v1774 = vadd.f32 %v1725, %v1773
    %1775 = vmatmul.bf16.gmra.mxu0 %v614
    %v1776 = vpop.f32.mrf.mxu0
    %v1777 = vadd.f32 %v1728, %v1776
    %v1778 = vpop.f32.mrf.mxu0
    %v1779 = vadd.f32 %v1730, %v1778
    %1780 = vmatmul.bf16.gmra.mxu0 %v618
    %v1781 = vpop.f32.mrf.mxu0
    %v1782 = vadd.f32 %v1733, %v1781
    %v1783 = vpop.f32.mrf.mxu0
    %v1784 = vadd.f32 %v1735, %v1783
    %1785 = vmatmul.bf16.gmra.mxu0 %v622
    %v1786 = vpop.f32.mrf.mxu0
    %v1787 = vadd.f32 %v1738, %v1786
    %v1788 = vpop.f32.mrf.mxu0
    %v1789 = vadd.f32 %v1740, %v1788
    %1790 = vmatmul.bf16.gmra.mxu0 %v626
    %v1791 = vpop.f32.mrf.mxu0
    %v1792 = vadd.f32 %v1743, %v1791
    %v1793 = vpop.f32.mrf.mxu0
    %v1794 = vadd.f32 %v1745, %v1793
    %1795 = vmatmul.bf16.gmra.mxu0 %v630
    %v1796 = vpop.f32.mrf.mxu0
    %v1797 = vadd.f32 %v1748, %v1796
    %v1798 = vpop.f32.mrf.mxu0
    %v1799 = vadd.f32 %v1750, %v1798
    %1800 = vdwg.mxu0
    %1801 = vmatpush.bf16.msra.mxu0 %v1183
    %1802 = vmatpush.bf16.msra.mxu0 %v1179
    %1803 = vmatpush.bf16.msra.mxu0 %v1175
    %1804 = vmatpush.bf16.msra.mxu0 %v1171
    %1805 = vmatpush.bf16.msra.mxu0 %v1167
    %1806 = vmatpush.bf16.msra.mxu0 %v1163
    %1807 = vmatpush.bf16.msra.mxu0 %v1159
    %1808 = vmatpush.bf16.msra.mxu0 %v1155
    %1809 = vmatmul.bf16.gmra.mxu0 %v599
    %v1810 = vpop.f32.mrf.mxu0
    %v1811 = vadd.f32 %v763, %v1810
    %v1812 = vpop.f32.mrf.mxu0
    %v1813 = vadd.f32 %v763, %v1812
    %1814 = vmatmul.bf16.gmra.mxu0 %v603
    %v1815 = vpop.f32.mrf.mxu0
    %v1816 = vadd.f32 %v763, %v1815
    %v1817 = vpop.f32.mrf.mxu0
    %v1818 = vadd.f32 %v763, %v1817
    %1819 = vmatmul.bf16.gmra.mxu0 %v607
    %v1820 = vpop.f32.mrf.mxu0
    %v1821 = vadd.f32 %v763, %v1820
    %v1822 = vpop.f32.mrf.mxu0
    %v1823 = vadd.f32 %v763, %v1822
    %1824 = vmatmul.bf16.gmra.mxu0 %v611
    %v1825 = vpop.f32.mrf.mxu0
    %v1826 = vadd.f32 %v763, %v1825
    %v1827 = vpop.f32.mrf.mxu0
    %v1828 = vadd.f32 %v763, %v1827
    %1829 = vmatmul.bf16.gmra.mxu0 %v615
    %v1830 = vpop.f32.mrf.mxu0
    %v1831 = vadd.f32 %v763, %v1830
    %v1832 = vpop.f32.mrf.mxu0
    %v1833 = vadd.f32 %v763, %v1832
    %1834 = vmatmul.bf16.gmra.mxu0 %v619
    %v1835 = vpop.f32.mrf.mxu0
    %v1836 = vadd.f32 %v763, %v1835
    %v1837 = vpop.f32.mrf.mxu0
    %v1838 = vadd.f32 %v763, %v1837
    %1839 = vmatmul.bf16.gmra.mxu0 %v623
    %v1840 = vpop.f32.mrf.mxu0
    %v1841 = vadd.f32 %v763, %v1840
    %v1842 = vpop.f32.mrf.mxu0
    %v1843 = vadd.f32 %v763, %v1842
    %1844 = vmatmul.bf16.gmra.mxu0 %v627
    %v1845 = vpop.f32.mrf.mxu0
    %v1846 = vadd.f32 %v763, %v1845
    %v1847 = vpop.f32.mrf.mxu0
    %v1848 = vadd.f32 %v763, %v1847
    %1849 = vdwg.mxu0
    %1850 = vmatpush.bf16.msra.mxu0 %v1215
    %1851 = vmatpush.bf16.msra.mxu0 %v1211
    %1852 = vmatpush.bf16.msra.mxu0 %v1207
    %1853 = vmatpush.bf16.msra.mxu0 %v1203
    %1854 = vmatpush.bf16.msra.mxu0 %v1199
    %1855 = vmatpush.bf16.msra.mxu0 %v1195
    %1856 = vmatpush.bf16.msra.mxu0 %v1191
    %1857 = vmatpush.bf16.msra.mxu0 %v1187
    %1858 = vmatmul.bf16.gmra.mxu0 %v600
    %v1859 = vpop.f32.mrf.mxu0
    %v1860 = vadd.f32 %v1811, %v1859
    %v1861 = vpop.f32.mrf.mxu0
    %v1862 = vadd.f32 %v1813, %v1861
    %1863 = vmatmul.bf16.gmra.mxu0 %v604
    %v1864 = vpop.f32.mrf.mxu0
    %v1865 = vadd.f32 %v1816, %v1864
    %v1866 = vpop.f32.mrf.mxu0
    %v1867 = vadd.f32 %v1818, %v1866
    %1868 = vmatmul.bf16.gmra.mxu0 %v608
    %v1869 = vpop.f32.mrf.mxu0
    %v1870 = vadd.f32 %v1821, %v1869
    %v1871 = vpop.f32.mrf.mxu0
    %v1872 = vadd.f32 %v1823, %v1871
    %1873 = vmatmul.bf16.gmra.mxu0 %v612
    %v1874 = vpop.f32.mrf.mxu0
    %v1875 = vadd.f32 %v1826, %v1874
    %v1876 = vpop.f32.mrf.mxu0
    %v1877 = vadd.f32 %v1828, %v1876
    %1878 = vmatmul.bf16.gmra.mxu0 %v616
    %v1879 = vpop.f32.mrf.mxu0
    %v1880 = vadd.f32 %v1831, %v1879
    %v1881 = vpop.f32.mrf.mxu0
    %v1882 = vadd.f32 %v1833, %v1881
    %1883 = vmatmul.bf16.gmra.mxu0 %v620
    %v1884 = vpop.f32.mrf.mxu0
    %v1885 = vadd.f32 %v1836, %v1884
    %v1886 = vpop.f32.mrf.mxu0
    %v1887 = vadd.f32 %v1838, %v1886
    %1888 = vmatmul.bf16.gmra.mxu0 %v624
    %v1889 = vpop.f32.mrf.mxu0
    %v1890 = vadd.f32 %v1841, %v1889
    %v1891 = vpop.f32.mrf.mxu0
    %v1892 = vadd.f32 %v1843, %v1891
    %1893 = vmatmul.bf16.gmra.mxu0 %v628
    %v1894 = vpop.f32.mrf.mxu0
    %v1895 = vadd.f32 %v1846, %v1894
    %v1896 = vpop.f32.mrf.mxu0
    %v1897 = vadd.f32 %v1848, %v1896
    %1898 = vdwg.mxu0
    %1899 = vmatpush.bf16.msra.mxu0 %v1247
    %1900 = vmatpush.bf16.msra.mxu0 %v1243
    %1901 = vmatpush.bf16.msra.mxu0 %v1239
    %1902 = vmatpush.bf16.msra.mxu0 %v1235
    %1903 = vmatpush.bf16.msra.mxu0 %v1231
    %1904 = vmatpush.bf16.msra.mxu0 %v1227
    %1905 = vmatpush.bf16.msra.mxu0 %v1223
    %1906 = vmatpush.bf16.msra.mxu0 %v1219
    %1907 = vmatmul.bf16.gmra.mxu0 %v601
    %v1908 = vpop.f32.mrf.mxu0
    %v1909 = vadd.f32 %v1860, %v1908
    %v1910 = vpop.f32.mrf.mxu0
    %v1911 = vadd.f32 %v1862, %v1910
    %1912 = vmatmul.bf16.gmra.mxu0 %v605
    %v1913 = vpop.f32.mrf.mxu0
    %v1914 = vadd.f32 %v1865, %v1913
    %v1915 = vpop.f32.mrf.mxu0
    %v1916 = vadd.f32 %v1867, %v1915
    %1917 = vmatmul.bf16.gmra.mxu0 %v609
    %v1918 = vpop.f32.mrf.mxu0
    %v1919 = vadd.f32 %v1870, %v1918
    %v1920 = vpop.f32.mrf.mxu0
    %v1921 = vadd.f32 %v1872, %v1920
    %1922 = vmatmul.bf16.gmra.mxu0 %v613
    %v1923 = vpop.f32.mrf.mxu0
    %v1924 = vadd.f32 %v1875, %v1923
    %v1925 = vpop.f32.mrf.mxu0
    %v1926 = vadd.f32 %v1877, %v1925
    %1927 = vmatmul.bf16.gmra.mxu0 %v617
    %v1928 = vpop.f32.mrf.mxu0
    %v1929 = vadd.f32 %v1880, %v1928
    %v1930 = vpop.f32.mrf.mxu0
    %v1931 = vadd.f32 %v1882, %v1930
    %1932 = vmatmul.bf16.gmra.mxu0 %v621
    %v1933 = vpop.f32.mrf.mxu0
    %v1934 = vadd.f32 %v1885, %v1933
    %v1935 = vpop.f32.mrf.mxu0
    %v1936 = vadd.f32 %v1887, %v1935
    %1937 = vmatmul.bf16.gmra.mxu0 %v625
    %v1938 = vpop.f32.mrf.mxu0
    %v1939 = vadd.f32 %v1890, %v1938
    %v1940 = vpop.f32.mrf.mxu0
    %v1941 = vadd.f32 %v1892, %v1940
    %1942 = vmatmul.bf16.gmra.mxu0 %v629
    %v1943 = vpop.f32.mrf.mxu0
    %v1944 = vadd.f32 %v1895, %v1943
    %v1945 = vpop.f32.mrf.mxu0
    %v1946 = vadd.f32 %v1897, %v1945
    %1947 = vdwg.mxu0
    %1948 = vmatpush.bf16.msra.mxu0 %v1279
    %1949 = vmatpush.bf16.msra.mxu0 %v1275
    %1950 = vmatpush.bf16.msra.mxu0 %v1271
    %1951 = vmatpush.bf16.msra.mxu0 %v1267
    %1952 = vmatpush.bf16.msra.mxu0 %v1263
    %1953 = vmatpush.bf16.msra.mxu0 %v1259
    %1954 = vmatpush.bf16.msra.mxu0 %v1255
    %1955 = vmatpush.bf16.msra.mxu0 %v1251
    %1956 = vmatmul.bf16.gmra.mxu0 %v602
    %v1957 = vpop.f32.mrf.mxu0
    %v1958 = vadd.f32 %v1909, %v1957
    %v1959 = vpop.f32.mrf.mxu0
    %v1960 = vadd.f32 %v1911, %v1959
    %1961 = vmatmul.bf16.gmra.mxu0 %v606
    %v1962 = vpop.f32.mrf.mxu0
    %v1963 = vadd.f32 %v1914, %v1962
    %v1964 = vpop.f32.mrf.mxu0
    %v1965 = vadd.f32 %v1916, %v1964
    %1966 = vmatmul.bf16.gmra.mxu0 %v610
    %v1967 = vpop.f32.mrf.mxu0
    %v1968 = vadd.f32 %v1919, %v1967
    %v1969 = vpop.f32.mrf.mxu0
    %v1970 = vadd.f32 %v1921, %v1969
    %1971 = vmatmul.bf16.gmra.mxu0 %v614
    %v1972 = vpop.f32.mrf.mxu0
    %v1973 = vadd.f32 %v1924, %v1972
    %v1974 = vpop.f32.mrf.mxu0
    %v1975 = vadd.f32 %v1926, %v1974
    %1976 = vmatmul.bf16.gmra.mxu0 %v618
    %v1977 = vpop.f32.mrf.mxu0
    %v1978 = vadd.f32 %v1929, %v1977
    %v1979 = vpop.f32.mrf.mxu0
    %v1980 = vadd.f32 %v1931, %v1979
    %1981 = vmatmul.bf16.gmra.mxu0 %v622
    %v1982 = vpop.f32.mrf.mxu0
    %v1983 = vadd.f32 %v1934, %v1982
    %v1984 = vpop.f32.mrf.mxu0
    %v1985 = vadd.f32 %v1936, %v1984
    %1986 = vmatmul.bf16.gmra.mxu0 %v626
    %v1987 = vpop.f32.mrf.mxu0
    %v1988 = vadd.f32 %v1939, %v1987
    %v1989 = vpop.f32.mrf.mxu0
    %v1990 = vadd.f32 %v1941, %v1989
    %1991 = vmatmul.bf16.gmra.mxu0 %v630
    %v1992 = vpop.f32.mrf.mxu0
    %v1993 = vadd.f32 %v1944, %v1992
    %v1994 = vpop.f32.mrf.mxu0
    %v1995 = vadd.f32 %v1946, %v1994
    %1996 = vdwg.mxu0
    %1997 = vmatpush.bf16.msra.mxu0 %v1184
    %1998 = vmatpush.bf16.msra.mxu0 %v1180
    %1999 = vmatpush.bf16.msra.mxu0 %v1176
    %2000 = vmatpush.bf16.msra.mxu0 %v1172
    %2001 = vmatpush.bf16.msra.mxu0 %v1168
    %2002 = vmatpush.bf16.msra.mxu0 %v1164
    %2003 = vmatpush.bf16.msra.mxu0 %v1160
    %2004 = vmatpush.bf16.msra.mxu0 %v1156
    %2005 = vmatmul.bf16.gmra.mxu0 %v599
    %v2006 = vpop.f32.mrf.mxu0
    %v2007 = vadd.f32 %v764, %v2006
    %v2008 = vpop.f32.mrf.mxu0
    %v2009 = vadd.f32 %v764, %v2008
    %2010 = vmatmul.bf16.gmra.mxu0 %v603
    %v2011 = vpop.f32.mrf.mxu0
    %v2012 = vadd.f32 %v764, %v2011
    %v2013 = vpop.f32.mrf.mxu0
    %v2014 = vadd.f32 %v764, %v2013
    %2015 = vmatmul.bf16.gmra.mxu0 %v607
    %v2016 = vpop.f32.mrf.mxu0
    %v2017 = vadd.f32 %v764, %v2016
    %v2018 = vpop.f32.mrf.mxu0
    %v2019 = vadd.f32 %v764, %v2018
    %2020 = vmatmul.bf16.gmra.mxu0 %v611
    %v2021 = vpop.f32.mrf.mxu0
    %v2022 = vadd.f32 %v764, %v2021
    %v2023 = vpop.f32.mrf.mxu0
    %v2024 = vadd.f32 %v764, %v2023
    %2025 = vmatmul.bf16.gmra.mxu0 %v615
    %v2026 = vpop.f32.mrf.mxu0
    %v2027 = vadd.f32 %v764, %v2026
    %v2028 = vpop.f32.mrf.mxu0
    %v2029 = vadd.f32 %v764, %v2028
    %2030 = vmatmul.bf16.gmra.mxu0 %v619
    %v2031 = vpop.f32.mrf.mxu0
    %v2032 = vadd.f32 %v764, %v2031
    %v2033 = vpop.f32.mrf.mxu0
    %v2034 = vadd.f32 %v764, %v2033
    %2035 = vmatmul.bf16.gmra.mxu0 %v623
    %v2036 = vpop.f32.mrf.mxu0
    %v2037 = vadd.f32 %v764, %v2036
    %v2038 = vpop.f32.mrf.mxu0
    %v2039 = vadd.f32 %v764, %v2038
    %2040 = vmatmul.bf16.gmra.mxu0 %v627
    %v2041 = vpop.f32.mrf.mxu0
    %v2042 = vadd.f32 %v764, %v2041
    %v2043 = vpop.f32.mrf.mxu0
    %v2044 = vadd.f32 %v764, %v2043
    %2045 = vdwg.mxu0
    %2046 = vmatpush.bf16.msra.mxu0 %v1216
    %2047 = vmatpush.bf16.msra.mxu0 %v1212
    %2048 = vmatpush.bf16.msra.mxu0 %v1208
    %2049 = vmatpush.bf16.msra.mxu0 %v1204
    %2050 = vmatpush.bf16.msra.mxu0 %v1200
    %2051 = vmatpush.bf16.msra.mxu0 %v1196
    %2052 = vmatpush.bf16.msra.mxu0 %v1192
    %2053 = vmatpush.bf16.msra.mxu0 %v1188
    %2054 = vmatmul.bf16.gmra.mxu0 %v600
    %v2055 = vpop.f32.mrf.mxu0
    %v2056 = vadd.f32 %v2007, %v2055
    %v2057 = vpop.f32.mrf.mxu0
    %v2058 = vadd.f32 %v2009, %v2057
    %2059 = vmatmul.bf16.gmra.mxu0 %v604
    %v2060 = vpop.f32.mrf.mxu0
    %v2061 = vadd.f32 %v2012, %v2060
    %v2062 = vpop.f32.mrf.mxu0
    %v2063 = vadd.f32 %v2014, %v2062
    %2064 = vmatmul.bf16.gmra.mxu0 %v608
    %v2065 = vpop.f32.mrf.mxu0
    %v2066 = vadd.f32 %v2017, %v2065
    %v2067 = vpop.f32.mrf.mxu0
    %v2068 = vadd.f32 %v2019, %v2067
    %2069 = vmatmul.bf16.gmra.mxu0 %v612
    %v2070 = vpop.f32.mrf.mxu0
    %v2071 = vadd.f32 %v2022, %v2070
    %v2072 = vpop.f32.mrf.mxu0
    %v2073 = vadd.f32 %v2024, %v2072
    %2074 = vmatmul.bf16.gmra.mxu0 %v616
    %v2075 = vpop.f32.mrf.mxu0
    %v2076 = vadd.f32 %v2027, %v2075
    %v2077 = vpop.f32.mrf.mxu0
    %v2078 = vadd.f32 %v2029, %v2077
    %2079 = vmatmul.bf16.gmra.mxu0 %v620
    %v2080 = vpop.f32.mrf.mxu0
    %v2081 = vadd.f32 %v2032, %v2080
    %v2082 = vpop.f32.mrf.mxu0
    %v2083 = vadd.f32 %v2034, %v2082
    %2084 = vmatmul.bf16.gmra.mxu0 %v624
    %v2085 = vpop.f32.mrf.mxu0
    %v2086 = vadd.f32 %v2037, %v2085
    %v2087 = vpop.f32.mrf.mxu0
    %v2088 = vadd.f32 %v2039, %v2087
    %2089 = vmatmul.bf16.gmra.mxu0 %v628
    %v2090 = vpop.f32.mrf.mxu0
    %v2091 = vadd.f32 %v2042, %v2090
    %v2092 = vpop.f32.mrf.mxu0
    %v2093 = vadd.f32 %v2044, %v2092
    %2094 = vdwg.mxu0
    %2095 = vmatpush.bf16.msra.mxu0 %v1248
    %2096 = vmatpush.bf16.msra.mxu0 %v1244
    %2097 = vmatpush.bf16.msra.mxu0 %v1240
    %2098 = vmatpush.bf16.msra.mxu0 %v1236
    %2099 = vmatpush.bf16.msra.mxu0 %v1232
    %2100 = vmatpush.bf16.msra.mxu0 %v1228
    %2101 = vmatpush.bf16.msra.mxu0 %v1224
    %2102 = vmatpush.bf16.msra.mxu0 %v1220
    %2103 = vmatmul.bf16.gmra.mxu0 %v601
    %v2104 = vpop.f32.mrf.mxu0
    %v2105 = vadd.f32 %v2056, %v2104
    %v2106 = vpop.f32.mrf.mxu0
    %v2107 = vadd.f32 %v2058, %v2106
    %2108 = vmatmul.bf16.gmra.mxu0 %v605
    %v2109 = vpop.f32.mrf.mxu0
    %v2110 = vadd.f32 %v2061, %v2109
    %v2111 = vpop.f32.mrf.mxu0
    %v2112 = vadd.f32 %v2063, %v2111
    %2113 = vmatmul.bf16.gmra.mxu0 %v609
    %v2114 = vpop.f32.mrf.mxu0
    %v2115 = vadd.f32 %v2066, %v2114
    %v2116 = vpop.f32.mrf.mxu0
    %v2117 = vadd.f32 %v2068, %v2116
    %2118 = vmatmul.bf16.gmra.mxu0 %v613
    %v2119 = vpop.f32.mrf.mxu0
    %v2120 = vadd.f32 %v2071, %v2119
    %v2121 = vpop.f32.mrf.mxu0
    %v2122 = vadd.f32 %v2073, %v2121
    %2123 = vmatmul.bf16.gmra.mxu0 %v617
    %v2124 = vpop.f32.mrf.mxu0
    %v2125 = vadd.f32 %v2076, %v2124
    %v2126 = vpop.f32.mrf.mxu0
    %v2127 = vadd.f32 %v2078, %v2126
    %2128 = vmatmul.bf16.gmra.mxu0 %v621
    %v2129 = vpop.f32.mrf.mxu0
    %v2130 = vadd.f32 %v2081, %v2129
    %v2131 = vpop.f32.mrf.mxu0
    %v2132 = vadd.f32 %v2083, %v2131
    %2133 = vmatmul.bf16.gmra.mxu0 %v625
    %v2134 = vpop.f32.mrf.mxu0
    %v2135 = vadd.f32 %v2086, %v2134
    %v2136 = vpop.f32.mrf.mxu0
    %v2137 = vadd.f32 %v2088, %v2136
    %2138 = vmatmul.bf16.gmra.mxu0 %v629
    %v2139 = vpop.f32.mrf.mxu0
    %v2140 = vadd.f32 %v2091, %v2139
    %v2141 = vpop.f32.mrf.mxu0
    %v2142 = vadd.f32 %v2093, %v2141
    %2143 = vdwg.mxu0
    %2144 = vmatpush.bf16.msra.mxu0 %v1280
    %2145 = vmatpush.bf16.msra.mxu0 %v1276
    %2146 = vmatpush.bf16.msra.mxu0 %v1272
    %2147 = vmatpush.bf16.msra.mxu0 %v1268
    %2148 = vmatpush.bf16.msra.mxu0 %v1264
    %2149 = vmatpush.bf16.msra.mxu0 %v1260
    %2150 = vmatpush.bf16.msra.mxu0 %v1256
    %2151 = vmatpush.bf16.msra.mxu0 %v1252
    %2152 = vmatmul.bf16.gmra.mxu0 %v602
    %v2153 = vpop.f32.mrf.mxu0
    %v2154 = vadd.f32 %v2105, %v2153
    %v2155 = vpop.f32.mrf.mxu0
    %v2156 = vadd.f32 %v2107, %v2155
    %2157 = vmatmul.bf16.gmra.mxu0 %v606
    %v2158 = vpop.f32.mrf.mxu0
    %v2159 = vadd.f32 %v2110, %v2158
    %v2160 = vpop.f32.mrf.mxu0
    %v2161 = vadd.f32 %v2112, %v2160
    %2162 = vmatmul.bf16.gmra.mxu0 %v610
    %v2163 = vpop.f32.mrf.mxu0
    %v2164 = vadd.f32 %v2115, %v2163
    %v2165 = vpop.f32.mrf.mxu0
    %v2166 = vadd.f32 %v2117, %v2165
    %2167 = vmatmul.bf16.gmra.mxu0 %v614
    %v2168 = vpop.f32.mrf.mxu0
    %v2169 = vadd.f32 %v2120, %v2168
    %v2170 = vpop.f32.mrf.mxu0
    %v2171 = vadd.f32 %v2122, %v2170
    %2172 = vmatmul.bf16.gmra.mxu0 %v618
    %v2173 = vpop.f32.mrf.mxu0
    %v2174 = vadd.f32 %v2125, %v2173
    %v2175 = vpop.f32.mrf.mxu0
    %v2176 = vadd.f32 %v2127, %v2175
    %2177 = vmatmul.bf16.gmra.mxu0 %v622
    %v2178 = vpop.f32.mrf.mxu0
    %v2179 = vadd.f32 %v2130, %v2178
    %v2180 = vpop.f32.mrf.mxu0
    %v2181 = vadd.f32 %v2132, %v2180
    %2182 = vmatmul.bf16.gmra.mxu0 %v626
    %v2183 = vpop.f32.mrf.mxu0
    %v2184 = vadd.f32 %v2135, %v2183
    %v2185 = vpop.f32.mrf.mxu0
    %v2186 = vadd.f32 %v2137, %v2185
    %2187 = vmatmul.bf16.gmra.mxu0 %v630
    %v2188 = vpop.f32.mrf.mxu0
    %v2189 = vadd.f32 %v2140, %v2188
    %v2190 = vpop.f32.mrf.mxu0
    %v2191 = vadd.f32 %v2142, %v2190
    %2192 = vdwg.mxu0
    %v2193 = vmax.f32 %v1566, 0.0
    %v2194 = vmax.f32 %v1762, 0.0
    %v2195 = vmax.f32 %v1958, 0.0
    %v2196 = vmax.f32 %v2154, 0.0
    %v2197 = vmax.f32 %v1568, 0.0
    %v2198 = vmax.f32 %v1764, 0.0
    %v2199 = vmax.f32 %v1960, 0.0
    %v2200 = vmax.f32 %v2156, 0.0
    %v2201 = vmax.f32 %v1571, 0.0
    %v2202 = vmax.f32 %v1767, 0.0
    %v2203 = vmax.f32 %v1963, 0.0
    %v2204 = vmax.f32 %v2159, 0.0
    %v2205 = vmax.f32 %v1573, 0.0
    %v2206 = vmax.f32 %v1769, 0.0
    %v2207 = vmax.f32 %v1965, 0.0
    %v2208 = vmax.f32 %v2161, 0.0
    %v2209 = vmax.f32 %v1576, 0.0
    %v2210 = vmax.f32 %v1772, 0.0
    %v2211 = vmax.f32 %v1968, 0.0
    %v2212 = vmax.f32 %v2164, 0.0
    %v2213 = vmax.f32 %v1578, 0.0
    %v2214 = vmax.f32 %v1774, 0.0
    %v2215 = vmax.f32 %v1970, 0.0
    %v2216 = vmax.f32 %v2166, 0.0
    %v2217 = vmax.f32 %v1581, 0.0
    %v2218 = vmax.f32 %v1777, 0.0
    %v2219 = vmax.f32 %v1973, 0.0
    %v2220 = vmax.f32 %v2169, 0.0
    %v2221 = vmax.f32 %v1583, 0.0
    %v2222 = vmax.f32 %v1779, 0.0
    %v2223 = vmax.f32 %v1975, 0.0
    %v2224 = vmax.f32 %v2171, 0.0
    %v2225 = vmax.f32 %v1586, 0.0
    %v2226 = vmax.f32 %v1782, 0.0
    %v2227 = vmax.f32 %v1978, 0.0
    %v2228 = vmax.f32 %v2174, 0.0
    %v2229 = vmax.f32 %v1588, 0.0
    %v2230 = vmax.f32 %v1784, 0.0
    %v2231 = vmax.f32 %v1980, 0.0
    %v2232 = vmax.f32 %v2176, 0.0
    %v2233 = vmax.f32 %v1591, 0.0
    %v2234 = vmax.f32 %v1787, 0.0
    %v2235 = vmax.f32 %v1983, 0.0
    %v2236 = vmax.f32 %v2179, 0.0
    %v2237 = vmax.f32 %v1593, 0.0
    %v2238 = vmax.f32 %v1789, 0.0
    %v2239 = vmax.f32 %v1985, 0.0
    %v2240 = vmax.f32 %v2181, 0.0
    %v2241 = vmax.f32 %v1596, 0.0
    %v2242 = vmax.f32 %v1792, 0.0
    %v2243 = vmax.f32 %v1988, 0.0
    %v2244 = vmax.f32 %v2184, 0.0
    %v2245 = vmax.f32 %v1598, 0.0
    %v2246 = vmax.f32 %v1794, 0.0
    %v2247 = vmax.f32 %v1990, 0.0
    %v2248 = vmax.f32 %v2186, 0.0
    %v2249 = vmax.f32 %v1601, 0.0
    %v2250 = vmax.f32 %v1797, 0.0
    %v2251 = vmax.f32 %v1993, 0.0
    %v2252 = vmax.f32 %v2189, 0.0
    %v2253 = vmax.f32 %v1603, 0.0
    %v2254 = vmax.f32 %v1799, 0.0
    %v2255 = vmax.f32 %v1995, 0.0
    %v2256 = vmax.f32 %v2191, 0.0
    %v2257 = vpack.c.bf16 %v2197, %v2193
    %v2258 = vpack.c.bf16 %v2198, %v2194
    %v2259 = vpack.c.bf16 %v2199, %v2195
    %v2260 = vpack.c.bf16 %v2200, %v2196
    %v2261 = vpack.c.bf16 %v2205, %v2201
    %v2262 = vpack.c.bf16 %v2206, %v2202
    %v2263 = vpack.c.bf16 %v2207, %v2203
    %v2264 = vpack.c.bf16 %v2208, %v2204
    %v2265 = vpack.c.bf16 %v2213, %v2209
    %v2266 = vpack.c.bf16 %v2214, %v2210
    %v2267 = vpack.c.bf16 %v2215, %v2211
    %v2268 = vpack.c.bf16 %v2216, %v2212
    %v2269 = vpack.c.bf16 %v2221, %v2217
    %v2270 = vpack.c.bf16 %v2222, %v2218
    %v2271 = vpack.c.bf16 %v2223, %v2219
    %v2272 = vpack.c.bf16 %v2224, %v2220
    %v2273 = vpack.c.bf16 %v2229, %v2225
    %v2274 = vpack.c.bf16 %v2230, %v2226
    %v2275 = vpack.c.bf16 %v2231, %v2227
    %v2276 = vpack.c.bf16 %v2232, %v2228
    %v2277 = vpack.c.bf16 %v2237, %v2233
    %v2278 = vpack.c.bf16 %v2238, %v2234
    %v2279 = vpack.c.bf16 %v2239, %v2235
    %v2280 = vpack.c.bf16 %v2240, %v2236
    %v2281 = vpack.c.bf16 %v2245, %v2241
    %v2282 = vpack.c.bf16 %v2246, %v2242
    %v2283 = vpack.c.bf16 %v2247, %v2243
    %v2284 = vpack.c.bf16 %v2248, %v2244
    %v2285 = vpack.c.bf16 %v2253, %v2249
    %v2286 = vpack.c.bf16 %v2254, %v2250
    %v2287 = vpack.c.bf16 %v2255, %v2251
    %v2288 = vpack.c.bf16 %v2256, %v2252
    %v2289 = vld [vmem:[#allocation6] sm:$0xf]
    %v2290 = vld [vmem:[#allocation6 + $0x4] sm:$0xf]
    %v2291 = vld [vmem:[#allocation6 + $0x8] sm:$0xf]
    %v2292 = vld [vmem:[#allocation6 + $0xc] sm:$0xf]
    %v2293 = vld [vmem:[#allocation6 + $0x10] sm:$0xf]
    %v2294 = vld [vmem:[#allocation6 + $0x14] sm:$0xf]
    %v2295 = vld [vmem:[#allocation6 + $0x18] sm:$0xf]
    %v2296 = vld [vmem:[#allocation6 + $0x1c] sm:$0xf]
    %v2297 = vld [vmem:[#allocation6 + $0x20] sm:$0xf]
    %v2298 = vld [vmem:[#allocation6 + $0x24] sm:$0xf]
    %v2299 = vld [vmem:[#allocation6 + $0x28] sm:$0xf]
    %v2300 = vld [vmem:[#allocation6 + $0x2c] sm:$0xf]
    %v2301 = vld [vmem:[#allocation6 + $0x30] sm:$0xf]
    %v2302 = vld [vmem:[#allocation6 + $0x34] sm:$0xf]
    %v2303 = vld [vmem:[#allocation6 + $0x38] sm:$0xf]
    %v2304 = vld [vmem:[#allocation6 + $0x3c] sm:$0xf]
    %v2305 = vld [vmem:[#allocation6 + $0x40] sm:$0xf]
    %v2306 = vld [vmem:[#allocation6 + $0x44] sm:$0xf]
    %v2307 = vld [vmem:[#allocation6 + $0x48] sm:$0xf]
    %v2308 = vld [vmem:[#allocation6 + $0x4c] sm:$0xf]
    %v2309 = vld [vmem:[#allocation6 + $0x50] sm:$0xf]
    %v2310 = vld [vmem:[#allocation6 + $0x54] sm:$0xf]
    %v2311 = vld [vmem:[#allocation6 + $0x58] sm:$0xf]
    %v2312 = vld [vmem:[#allocation6 + $0x5c] sm:$0xf]
    %v2313 = vld [vmem:[#allocation6 + $0x60] sm:$0xf]
    %v2314 = vld [vmem:[#allocation6 + $0x64] sm:$0xf]
    %v2315 = vld [vmem:[#allocation6 + $0x68] sm:$0xf]
    %v2316 = vld [vmem:[#allocation6 + $0x6c] sm:$0xf]
    %v2317 = vld [vmem:[#allocation6 + $0x70] sm:$0xf]
    %v2318 = vld [vmem:[#allocation6 + $0x74] sm:$0xf]
    %v2319 = vld [vmem:[#allocation6 + $0x78] sm:$0xf]
    %v2320 = vld [vmem:[#allocation6 + $0x7c] sm:$0xf]
    %v2321 = vld [vmem:[#allocation6 + $0x80] sm:$0xf]
    %v2322 = vld [vmem:[#allocation6 + $0x84] sm:$0xf]
    %v2323 = vld [vmem:[#allocation6 + $0x88] sm:$0xf]
    %v2324 = vld [vmem:[#allocation6 + $0x8c] sm:$0xf]
    %v2325 = vld [vmem:[#allocation6 + $0x90] sm:$0xf]
    %v2326 = vld [vmem:[#allocation6 + $0x94] sm:$0xf]
    %v2327 = vld [vmem:[#allocation6 + $0x98] sm:$0xf]
    %v2328 = vld [vmem:[#allocation6 + $0x9c] sm:$0xf]
    %v2329 = vld [vmem:[#allocation6 + $0xa0] sm:$0xf]
    %v2330 = vld [vmem:[#allocation6 + $0xa4] sm:$0xf]
    %v2331 = vld [vmem:[#allocation6 + $0xa8] sm:$0xf]
    %v2332 = vld [vmem:[#allocation6 + $0xac] sm:$0xf]
    %v2333 = vld [vmem:[#allocation6 + $0xb0] sm:$0xf]
    %v2334 = vld [vmem:[#allocation6 + $0xb4] sm:$0xf]
    %v2335 = vld [vmem:[#allocation6 + $0xb8] sm:$0xf]
    %v2336 = vld [vmem:[#allocation6 + $0xbc] sm:$0xf]
    %v2337 = vld [vmem:[#allocation6 + $0xc0] sm:$0xf]
    %v2338 = vld [vmem:[#allocation6 + $0xc4] sm:$0xf]
    %v2339 = vld [vmem:[#allocation6 + $0xc8] sm:$0xf]
    %v2340 = vld [vmem:[#allocation6 + $0xcc] sm:$0xf]
    %v2341 = vld [vmem:[#allocation6 + $0xd0] sm:$0xf]
    %v2342 = vld [vmem:[#allocation6 + $0xd4] sm:$0xf]
    %v2343 = vld [vmem:[#allocation6 + $0xd8] sm:$0xf]
    %v2344 = vld [vmem:[#allocation6 + $0xdc] sm:$0xf]
    %v2345 = vld [vmem:[#allocation6 + $0xe0] sm:$0xf]
    %v2346 = vld [vmem:[#allocation6 + $0xe4] sm:$0xf]
    %v2347 = vld [vmem:[#allocation6 + $0xe8] sm:$0xf]
    %v2348 = vld [vmem:[#allocation6 + $0xec] sm:$0xf]
    %v2349 = vld [vmem:[#allocation6 + $0xf0] sm:$0xf]
    %v2350 = vld [vmem:[#allocation6 + $0xf4] sm:$0xf]
    %v2351 = vld [vmem:[#allocation6 + $0xf8] sm:$0xf]
    %v2352 = vld [vmem:[#allocation6 + $0xfc] sm:$0xf]
    %v2353 = vld [vmem:[%s6] sm:$0x1]
    %v2355 = vperm.slane %v2353, 0
    %v2421 = vunpack.c.l.b16 %v2289
    %v2422 = vunpack.c.l.b16 %v2290
    %v2423 = vunpack.c.l.b16 %v2291
    %v2424 = vunpack.c.l.b16 %v2292
    %v2425 = vunpack.c.l.b16 %v2293
    %v2426 = vunpack.c.l.b16 %v2294
    %v2427 = vunpack.c.l.b16 %v2295
    %v2428 = vunpack.c.l.b16 %v2296
    %v2429 = vunpack.c.l.b16 %v2297
    %v2430 = vunpack.c.l.b16 %v2298
    %v2431 = vunpack.c.l.b16 %v2299
    %v2432 = vunpack.c.l.b16 %v2300
    %v2433 = vunpack.c.l.b16 %v2301
    %v2434 = vunpack.c.l.b16 %v2302
    %v2435 = vunpack.c.l.b16 %v2303
    %v2436 = vunpack.c.l.b16 %v2304
    %v2437 = vunpack.c.l.b16 %v2305
    %v2438 = vunpack.c.l.b16 %v2306
    %v2439 = vunpack.c.l.b16 %v2307
    %v2440 = vunpack.c.l.b16 %v2308
    %v2441 = vunpack.c.l.b16 %v2309
    %v2442 = vunpack.c.l.b16 %v2310
    %v2443 = vunpack.c.l.b16 %v2311
    %v2444 = vunpack.c.l.b16 %v2312
    %v2445 = vunpack.c.l.b16 %v2313
    %v2446 = vunpack.c.l.b16 %v2314
    %v2447 = vunpack.c.l.b16 %v2315
    %v2448 = vunpack.c.l.b16 %v2316
    %v2449 = vunpack.c.l.b16 %v2317
    %v2450 = vunpack.c.l.b16 %v2318
    %v2451 = vunpack.c.l.b16 %v2319
    %v2452 = vunpack.c.l.b16 %v2320
    %v2453 = vunpack.c.l.b16 %v2321
    %v2454 = vunpack.c.l.b16 %v2322
    %v2455 = vunpack.c.l.b16 %v2323
    %v2456 = vunpack.c.l.b16 %v2324
    %v2457 = vunpack.c.l.b16 %v2325
    %v2458 = vunpack.c.l.b16 %v2326
    %v2459 = vunpack.c.l.b16 %v2327
    %v2460 = vunpack.c.l.b16 %v2328
    %v2461 = vunpack.c.l.b16 %v2329
    %v2462 = vunpack.c.l.b16 %v2330
    %v2463 = vunpack.c.l.b16 %v2331
    %v2464 = vunpack.c.l.b16 %v2332
    %v2465 = vunpack.c.l.b16 %v2333
    %v2466 = vunpack.c.l.b16 %v2334
    %v2467 = vunpack.c.l.b16 %v2335
    %v2468 = vunpack.c.l.b16 %v2336
    %v2469 = vunpack.c.l.b16 %v2337
    %v2470 = vunpack.c.l.b16 %v2338
    %v2471 = vunpack.c.l.b16 %v2339
    %v2472 = vunpack.c.l.b16 %v2340
    %v2473 = vunpack.c.l.b16 %v2341
    %v2474 = vunpack.c.l.b16 %v2342
    %v2475 = vunpack.c.l.b16 %v2343
    %v2476 = vunpack.c.l.b16 %v2344
    %v2477 = vunpack.c.l.b16 %v2345
    %v2478 = vunpack.c.l.b16 %v2346
    %v2479 = vunpack.c.l.b16 %v2347
    %v2480 = vunpack.c.l.b16 %v2348
    %v2481 = vunpack.c.l.b16 %v2349
    %v2482 = vunpack.c.l.b16 %v2350
    %v2483 = vunpack.c.l.b16 %v2351
    %v2484 = vunpack.c.l.b16 %v2352
    %v2485 = vpack.c.b16 %v2422, %v2421
    %v2486 = vpack.c.b16 %v2424, %v2423
    %v2487 = vpack.c.b16 %v2426, %v2425
    %v2488 = vpack.c.b16 %v2428, %v2427
    %v2489 = vpack.c.b16 %v2430, %v2429
    %v2490 = vpack.c.b16 %v2432, %v2431
    %v2491 = vpack.c.b16 %v2434, %v2433
    %v2492 = vpack.c.b16 %v2436, %v2435
    %v2493 = vpack.c.b16 %v2438, %v2437
    %v2494 = vpack.c.b16 %v2440, %v2439
    %v2495 = vpack.c.b16 %v2442, %v2441
    %v2496 = vpack.c.b16 %v2444, %v2443
    %v2497 = vpack.c.b16 %v2446, %v2445
    %v2498 = vpack.c.b16 %v2448, %v2447
    %v2499 = vpack.c.b16 %v2450, %v2449
    %v2500 = vpack.c.b16 %v2452, %v2451
    %v2501 = vpack.c.b16 %v2454, %v2453
    %v2502 = vpack.c.b16 %v2456, %v2455
    %v2503 = vpack.c.b16 %v2458, %v2457
    %v2504 = vpack.c.b16 %v2460, %v2459
    %v2505 = vpack.c.b16 %v2462, %v2461
    %v2506 = vpack.c.b16 %v2464, %v2463
    %v2507 = vpack.c.b16 %v2466, %v2465
    %v2508 = vpack.c.b16 %v2468, %v2467
    %v2509 = vpack.c.b16 %v2470, %v2469
    %v2510 = vpack.c.b16 %v2472, %v2471
    %v2511 = vpack.c.b16 %v2474, %v2473
    %v2512 = vpack.c.b16 %v2476, %v2475
    %v2513 = vpack.c.b16 %v2478, %v2477
    %v2514 = vpack.c.b16 %v2480, %v2479
    %v2515 = vpack.c.b16 %v2482, %v2481
    %v2516 = vpack.c.b16 %v2484, %v2483
    %2549 = vmatpush.bf16.msra.mxu0 %v2492
    %2550 = vmatpush.bf16.msra.mxu0 %v2491
    %2551 = vmatpush.bf16.msra.mxu0 %v2490
    %2552 = vmatpush.bf16.msra.mxu0 %v2489
    %2553 = vmatpush.bf16.msra.mxu0 %v2488
    %2554 = vmatpush.bf16.msra.mxu0 %v2487
    %2555 = vmatpush.bf16.msra.mxu0 %v2486
    %2556 = vmatpush.bf16.msra.mxu0 %v2485
    %2557 = vmatmul.bf16.gmra.mxu0 %v2257
    %v2558 = vpop.f32.mrf.mxu0
    %v2559 = vadd.f32 %v2355, %v2558
    %v2560 = vpop.f32.mrf.mxu0
    %v2561 = vadd.f32 %v2355, %v2560
    %2562 = vmatmul.bf16.gmra.mxu0 %v2261
    %v2563 = vpop.f32.mrf.mxu0
    %v2564 = vadd.f32 %v2355, %v2563
    %v2565 = vpop.f32.mrf.mxu0
    %v2566 = vadd.f32 %v2355, %v2565
    %2567 = vmatmul.bf16.gmra.mxu0 %v2265
    %v2568 = vpop.f32.mrf.mxu0
    %v2569 = vadd.f32 %v2355, %v2568
    %v2570 = vpop.f32.mrf.mxu0
    %v2571 = vadd.f32 %v2355, %v2570
    %2572 = vmatmul.bf16.gmra.mxu0 %v2269
    %v2573 = vpop.f32.mrf.mxu0
    %v2574 = vadd.f32 %v2355, %v2573
    %v2575 = vpop.f32.mrf.mxu0
    %v2576 = vadd.f32 %v2355, %v2575
    %2577 = vmatmul.bf16.gmra.mxu0 %v2273
    %v2578 = vpop.f32.mrf.mxu0
    %v2579 = vadd.f32 %v2355, %v2578
    %v2580 = vpop.f32.mrf.mxu0
    %v2581 = vadd.f32 %v2355, %v2580
    %2582 = vmatmul.bf16.gmra.mxu0 %v2277
    %v2583 = vpop.f32.mrf.mxu0
    %v2584 = vadd.f32 %v2355, %v2583
    %v2585 = vpop.f32.mrf.mxu0
    %v2586 = vadd.f32 %v2355, %v2585
    %2587 = vmatmul.bf16.gmra.mxu0 %v2281
    %v2588 = vpop.f32.mrf.mxu0
    %v2589 = vadd.f32 %v2355, %v2588
    %v2590 = vpop.f32.mrf.mxu0
    %v2591 = vadd.f32 %v2355, %v2590
    %2592 = vmatmul.bf16.gmra.mxu0 %v2285
    %v2593 = vpop.f32.mrf.mxu0
    %v2594 = vadd.f32 %v2355, %v2593
    %v2595 = vpop.f32.mrf.mxu0
    %v2596 = vadd.f32 %v2355, %v2595
    %2597 = vdwg.mxu0
    %2598 = vmatpush.bf16.msra.mxu0 %v2500
    %2599 = vmatpush.bf16.msra.mxu0 %v2499
    %2600 = vmatpush.bf16.msra.mxu0 %v2498
    %2601 = vmatpush.bf16.msra.mxu0 %v2497
    %2602 = vmatpush.bf16.msra.mxu0 %v2496
    %2603 = vmatpush.bf16.msra.mxu0 %v2495
    %2604 = vmatpush.bf16.msra.mxu0 %v2494
    %2605 = vmatpush.bf16.msra.mxu0 %v2493
    %2606 = vmatmul.bf16.gmra.mxu0 %v2258
    %v2607 = vpop.f32.mrf.mxu0
    %v2608 = vadd.f32 %v2559, %v2607
    %v2609 = vpop.f32.mrf.mxu0
    %v2610 = vadd.f32 %v2561, %v2609
    %2611 = vmatmul.bf16.gmra.mxu0 %v2262
    %v2612 = vpop.f32.mrf.mxu0
    %v2613 = vadd.f32 %v2564, %v2612
    %v2614 = vpop.f32.mrf.mxu0
    %v2615 = vadd.f32 %v2566, %v2614
    %2616 = vmatmul.bf16.gmra.mxu0 %v2266
    %v2617 = vpop.f32.mrf.mxu0
    %v2618 = vadd.f32 %v2569, %v2617
    %v2619 = vpop.f32.mrf.mxu0
    %v2620 = vadd.f32 %v2571, %v2619
    %2621 = vmatmul.bf16.gmra.mxu0 %v2270
    %v2622 = vpop.f32.mrf.mxu0
    %v2623 = vadd.f32 %v2574, %v2622
    %v2624 = vpop.f32.mrf.mxu0
    %v2625 = vadd.f32 %v2576, %v2624
    %2626 = vmatmul.bf16.gmra.mxu0 %v2274
    %v2627 = vpop.f32.mrf.mxu0
    %v2628 = vadd.f32 %v2579, %v2627
    %v2629 = vpop.f32.mrf.mxu0
    %v2630 = vadd.f32 %v2581, %v2629
    %2631 = vmatmul.bf16.gmra.mxu0 %v2278
    %v2632 = vpop.f32.mrf.mxu0
    %v2633 = vadd.f32 %v2584, %v2632
    %v2634 = vpop.f32.mrf.mxu0
    %v2635 = vadd.f32 %v2586, %v2634
    %2636 = vmatmul.bf16.gmra.mxu0 %v2282
    %v2637 = vpop.f32.mrf.mxu0
    %v2638 = vadd.f32 %v2589, %v2637
    %v2639 = vpop.f32.mrf.mxu0
    %v2640 = vadd.f32 %v2591, %v2639
    %2641 = vmatmul.bf16.gmra.mxu0 %v2286
    %v2642 = vpop.f32.mrf.mxu0
    %v2643 = vadd.f32 %v2594, %v2642
    %v2644 = vpop.f32.mrf.mxu0
    %v2645 = vadd.f32 %v2596, %v2644
    %2646 = vdwg.mxu0
    %2647 = vmatpush.bf16.msra.mxu0 %v2508
    %2648 = vmatpush.bf16.msra.mxu0 %v2507
    %2649 = vmatpush.bf16.msra.mxu0 %v2506
    %2650 = vmatpush.bf16.msra.mxu0 %v2505
    %2651 = vmatpush.bf16.msra.mxu0 %v2504
    %2652 = vmatpush.bf16.msra.mxu0 %v2503
    %2653 = vmatpush.bf16.msra.mxu0 %v2502
    %2654 = vmatpush.bf16.msra.mxu0 %v2501
    %2655 = vmatmul.bf16.gmra.mxu0 %v2259
    %v2656 = vpop.f32.mrf.mxu0
    %v2657 = vadd.f32 %v2608, %v2656
    %v2658 = vpop.f32.mrf.mxu0
    %v2659 = vadd.f32 %v2610, %v2658
    %2660 = vmatmul.bf16.gmra.mxu0 %v2263
    %v2661 = vpop.f32.mrf.mxu0
    %v2662 = vadd.f32 %v2613, %v2661
    %v2663 = vpop.f32.mrf.mxu0
    %v2664 = vadd.f32 %v2615, %v2663
    %2665 = vmatmul.bf16.gmra.mxu0 %v2267
    %v2666 = vpop.f32.mrf.mxu0
    %v2667 = vadd.f32 %v2618, %v2666
    %v2668 = vpop.f32.mrf.mxu0
    %v2669 = vadd.f32 %v2620, %v2668
    %2670 = vmatmul.bf16.gmra.mxu0 %v2271
    %v2671 = vpop.f32.mrf.mxu0
    %v2672 = vadd.f32 %v2623, %v2671
    %v2673 = vpop.f32.mrf.mxu0
    %v2674 = vadd.f32 %v2625, %v2673
    %2675 = vmatmul.bf16.gmra.mxu0 %v2275
    %v2676 = vpop.f32.mrf.mxu0
    %v2677 = vadd.f32 %v2628, %v2676
    %v2678 = vpop.f32.mrf.mxu0
    %v2679 = vadd.f32 %v2630, %v2678
    %2680 = vmatmul.bf16.gmra.mxu0 %v2279
    %v2681 = vpop.f32.mrf.mxu0
    %v2682 = vadd.f32 %v2633, %v2681
    %v2683 = vpop.f32.mrf.mxu0
    %v2684 = vadd.f32 %v2635, %v2683
    %2685 = vmatmul.bf16.gmra.mxu0 %v2283
    %v2686 = vpop.f32.mrf.mxu0
    %v2687 = vadd.f32 %v2638, %v2686
    %v2688 = vpop.f32.mrf.mxu0
    %v2689 = vadd.f32 %v2640, %v2688
    %2690 = vmatmul.bf16.gmra.mxu0 %v2287
    %v2691 = vpop.f32.mrf.mxu0
    %v2692 = vadd.f32 %v2643, %v2691
    %v2693 = vpop.f32.mrf.mxu0
    %v2694 = vadd.f32 %v2645, %v2693
    %2695 = vdwg.mxu0
    %2696 = vmatpush.bf16.msra.mxu0 %v2516
    %2697 = vmatpush.bf16.msra.mxu0 %v2515
    %2698 = vmatpush.bf16.msra.mxu0 %v2514
    %2699 = vmatpush.bf16.msra.mxu0 %v2513
    %2700 = vmatpush.bf16.msra.mxu0 %v2512
    %2701 = vmatpush.bf16.msra.mxu0 %v2511
    %2702 = vmatpush.bf16.msra.mxu0 %v2510
    %2703 = vmatpush.bf16.msra.mxu0 %v2509
    %2704 = vmatmul.bf16.gmra.mxu0 %v2260
    %v2705 = vpop.f32.mrf.mxu0
    %v2706 = vadd.f32 %v2657, %v2705
    %v2707 = vpop.f32.mrf.mxu0
    %v2708 = vadd.f32 %v2659, %v2707
    %2709 = vmatmul.bf16.gmra.mxu0 %v2264
    %v2710 = vpop.f32.mrf.mxu0
    %v2711 = vadd.f32 %v2662, %v2710
    %v2712 = vpop.f32.mrf.mxu0
    %v2713 = vadd.f32 %v2664, %v2712
    %2714 = vmatmul.bf16.gmra.mxu0 %v2268
    %v2715 = vpop.f32.mrf.mxu0
    %v2716 = vadd.f32 %v2667, %v2715
    %v2717 = vpop.f32.mrf.mxu0
    %v2718 = vadd.f32 %v2669, %v2717
    %2719 = vmatmul.bf16.gmra.mxu0 %v2272
    %v2720 = vpop.f32.mrf.mxu0
    %v2721 = vadd.f32 %v2672, %v2720
    %v2722 = vpop.f32.mrf.mxu0
    %v2723 = vadd.f32 %v2674, %v2722
    %2724 = vmatmul.bf16.gmra.mxu0 %v2276
    %v2725 = vpop.f32.mrf.mxu0
    %v2726 = vadd.f32 %v2677, %v2725
    %v2727 = vpop.f32.mrf.mxu0
    %v2728 = vadd.f32 %v2679, %v2727
    %2729 = vmatmul.bf16.gmra.mxu0 %v2280
    %v2730 = vpop.f32.mrf.mxu0
    %v2731 = vadd.f32 %v2682, %v2730
    %v2732 = vpop.f32.mrf.mxu0
    %v2733 = vadd.f32 %v2684, %v2732
    %2734 = vmatmul.bf16.gmra.mxu0 %v2284
    %v2735 = vpop.f32.mrf.mxu0
    %v2736 = vadd.f32 %v2687, %v2735
    %v2737 = vpop.f32.mrf.mxu0
    %v2738 = vadd.f32 %v2689, %v2737
    %2739 = vmatmul.bf16.gmra.mxu0 %v2288
    %v2740 = vpop.f32.mrf.mxu0
    %v2741 = vadd.f32 %v2692, %v2740
    %v2742 = vpop.f32.mrf.mxu0
    %v2743 = vadd.f32 %v2694, %v2742
    %2744 = vdwg.mxu0
    %2745 = vst [vmem:[%s7] sm:$0xff] %v2706
    %2746 = vst [vmem:[%s7 + $0x8] sm:$0xff] %v2708
    %2747 = vst [vmem:[%s7 + $0x10] sm:$0xff] %v2711
    %2748 = vst [vmem:[%s7 + $0x18] sm:$0xff] %v2713
    %2749 = vst [vmem:[%s7 + $0x20] sm:$0xff] %v2716
    %2750 = vst [vmem:[%s7 + $0x28] sm:$0xff] %v2718
    %2751 = vst [vmem:[%s7 + $0x30] sm:$0xff] %v2721
    %2752 = vst [vmem:[%s7 + $0x38] sm:$0xff] %v2723
    %2753 = vst [vmem:[%s7 + $0x40] sm:$0xff] %v2726
    %2754 = vst [vmem:[%s7 + $0x48] sm:$0xff] %v2728
    %2755 = vst [vmem:[%s7 + $0x50] sm:$0xff] %v2731
    %2756 = vst [vmem:[%s7 + $0x58] sm:$0xff] %v2733
    %2757 = vst [vmem:[%s7 + $0x60] sm:$0xff] %v2736
    %2758 = vst [vmem:[%s7 + $0x68] sm:$0xff] %v2738
    %2759 = vst [vmem:[%s7 + $0x70] sm:$0xff] %v2741
    %2760 = vst [vmem:[%s7 + $0x78] sm:$0xff] %v2743
    // Predicated region
    $region42: #{fc_block_forward.1} parent=1 // pred_check
      _
    $region43: #{fc_block_forward.1} parent=1 // pred_check_branch
      %2762 = sbr.rel (0) target = $region45
    $region44: #{fc_block_forward.1} parent=1 // pred_region
      _
    $region45: #{fc_block_forward.1} parent=1 // pred_fallthru
      _
    // Predicated region
    $region46: #{fc_block_forward.1} parent=1 // pred_check
      _
    $region47: #{fc_block_forward.1} parent=1 // pred_check_branch
      %2764 = sbr.rel (0) target = $region49
    $region48: #{fc_block_forward.1} parent=1 // pred_region
      _
    $region49: #{fc_block_forward.1} parent=1 // pred_fallthru
      _
    %2765 = vsyncpa [#allocation3], 1
    %2766 = vsyncpa [#allocation5], 1

</llo_original>
